<compile_context>
chip_gen: v5e
topology: v5e:2x2
jax: 0.10.0
libtpu: 0.0.40
codegen_flags: <defaults>
</compile_context>

<pallas_src>
import functools

import jax
import jax.numpy as jnp
from jax.experimental import pallas as pl
from jax.experimental.pallas import tpu as pltpu


def _layernorm(x, gamma, beta, eps=1e-5):
    # f32 statistics + rsqrt (EUP), matches nn.LayerNorm(eps=1e-5).
    mu = jnp.mean(x, axis=-1, keepdims=True)
    var = jnp.mean((x - mu) * (x - mu), axis=-1, keepdims=True)
    inv = jax.lax.rsqrt(var + eps)
    return (x - mu) * inv * gamma + beta


def _fused_encoder_kernel(
        x_ref,
        wq_ref, wk_ref, wv_ref, bq_ref, bk_ref, bv_ref,
        wo_ref, bo_ref, ln1g_ref, ln1b_ref,
        w1_ref, b1_ref, w2_ref, b2_ref, ln2g_ref, ln2b_ref,
        o_ref,
        x_act, k_s, v_s,
        *, num_heads, q_block, ff_block):
    l = pl.program_id(1)
    qi = pl.program_id(2)
    num_layers = pl.num_programs(1)

    S, D = x_act.shape
    H = num_heads
    dh = D // H
    FF = w1_ref.shape[-1]
    cdt = x_act.dtype                       # compute (MXU) dtype, e.g. bf16
    scale = 1.0 / float(dh) ** 0.5

    # (1) Load this batch element's activations into resident VMEM scratch once.
    @pl.when((l == 0) & (qi == 0))
    def _():
        x_act[...] = x_ref[0].astype(cdt)

    # (2) Project K/V for the whole sequence once per layer and cache in VMEM.
    #     Doing this before any q-tile writes makes the in-place activation
    #     update in (5) safe.
    @pl.when(qi == 0)
    def _():
        xs = x_act[...]                     # (S, D)
        k_s[...] = (jnp.dot(xs, wk_ref[0], preferred_element_type=jnp.float32)
                    + bk_ref[0]).astype(cdt)
        v_s[...] = (jnp.dot(xs, wv_ref[0], preferred_element_type=jnp.float32)
                    + bv_ref[0]).astype(cdt)

    # (3) Multi-head self-attention for this q-tile (heads batched in one einsum).
    row = pl.multiple_of(qi * q_block, q_block)
    xq = x_act[pl.ds(row, q_block), :]      # (tq, D)

    q = (jnp.dot(xq, wq_ref[0], preferred_element_type=jnp.float32)
         + bq_ref[0]).astype(cdt)           # (tq, D)
    qh = q.reshape(q_block, H, dh)
    kh = k_s[...].reshape(S, H, dh)
    vh = v_s[...].reshape(S, H, dh)

    scores = jnp.einsum("qhd,khd->hqk", qh, kh,
                        preferred_element_type=jnp.float32) * scale
    m = jnp.max(scores, axis=-1, keepdims=True)
    e = jnp.exp(scores - m)
    p = e * pl.reciprocal(jnp.sum(e, axis=-1, keepdims=True), approx=True)
    ctx = jnp.einsum("hqk,khd->qhd", p.astype(cdt), vh,
                     preferred_element_type=jnp.float32)
    ctx = ctx.reshape(q_block, D).astype(cdt)

    attn_out = (jnp.dot(ctx, wo_ref[0], preferred_element_type=jnp.float32)
                + bo_ref[0])
    x1 = _layernorm(xq.astype(jnp.float32) + attn_out, ln1g_ref[0], ln1b_ref[0])

    # (4) Position-wise FFN, chunked over the hidden (FF) dim so the (tq, FF)
    #     intermediate is never materialized.  Static chunk loop -> static,
    #     lane-aligned weight slices (ref views, zero cost).
    x1c = x1.astype(cdt)
    ff = jnp.zeros((q_block, D), jnp.float32)
    for c in range(FF // ff_block):
        c0 = c * ff_block
        h = (jnp.dot(x1c, w1_ref[0, :, c0:c0 + ff_block],
                     preferred_element_type=jnp.float32)
             + b1_ref[0, :, c0:c0 + ff_block])
        h = jnp.maximum(h, 0.0).astype(cdt)         # ReLU
        ff = ff + jnp.dot(h, w2_ref[0, c0:c0 + ff_block, :],
                          preferred_element_type=jnp.float32)
    ff = ff + b2_ref[0]
    x2 = _layernorm(x1 + ff, ln2g_ref[0], ln2b_ref[0])

    # (5) In-place activation update for the next layer; the final layer also
    #     writes the (batch-resident, lane-dense) output block.
    x_act[pl.ds(row, q_block), :] = x2.astype(cdt)

    @pl.when(l == num_layers - 1)
    def _():
        o_ref[0, pl.ds(row, q_block), :] = x2.astype(o_ref.dtype)


def transformer_encoder(x, params, num_heads, *, q_block=None, ff_block=None,
                        compute_dtype=jnp.bfloat16):
    """Fused forward pass over the whole encoder stack (eval, mask=None)."""
    B, S, D = x.shape
    L = len(params)
    H = num_heads
    assert D % H == 0
    dh = D // H
    FF = params[0]["w1"].shape[1]

    if q_block is None:
        q_block = S if S <= 128 else 128
    assert S % q_block == 0, "sequence length must be divisible by q_block"
    if ff_block is None:
        ff_block = FF if FF <= 512 else 512
    assert FF % ff_block == 0, "FF dim must be divisible by ff_block"

    cdt = compute_dtype
    f32 = jnp.float32

    # Repack Wqkv / bqkv from per-head [q|k|v] column blocks to contiguous,
    # lane-aligned [Wq | Wk | Wv] matrices, then stack all layers on a leading
    # axis so a single 'layer' grid axis streams them through the pipeline.
    wq_l, wk_l, wv_l, bq_l, bk_l, bv_l = [], [], [], [], [], []
    for p in params:
        w = p["wqkv"].reshape(D, H, 3, dh)
        b = p["bqkv"].reshape(1, H, 3, dh)
        wq_l.append(w[:, :, 0, :].reshape(D, D))
        wk_l.append(w[:, :, 1, :].reshape(D, D))
        wv_l.append(w[:, :, 2, :].reshape(D, D))
        bq_l.append(b[:, :, 0, :].reshape(1, D))
        bk_l.append(b[:, :, 1, :].reshape(1, D))
        bv_l.append(b[:, :, 2, :].reshape(1, D))

    def stk(arrs, dt):
        return jnp.stack(arrs, axis=0).astype(dt)

    # Matmul operands in bf16; biases / LayerNorm params stay f32.
    weights = [
        stk(wq_l, cdt), stk(wk_l, cdt), stk(wv_l, cdt),
        stk(bq_l, f32), stk(bk_l, f32), stk(bv_l, f32),
        stk([p["wo"] for p in params], cdt),
        stk([p["bo"] for p in params], f32),
        stk([p["ln1g"] for p in params], f32),
        stk([p["ln1b"] for p in params], f32),
        stk([p["w1"] for p in params], cdt),
        stk([p["b1"] for p in params], f32),
        stk([p["w2"] for p in params], cdt),
        stk([p["b2"] for p in params], f32),
        stk([p["ln2g"] for p in params], f32),
        stk([p["ln2b"] for p in params], f32),
    ]

    x_c = x.astype(cdt)

    grid = (B, L, S // q_block)
    in_specs = [pl.BlockSpec((1, S, D), lambda b, l, qi: (b, 0, 0))]
    in_specs += [pl.BlockSpec((1,) + tuple(w.shape[1:]),
                              lambda b, l, qi: (l, 0, 0))
                 for w in weights]
    out_specs = pl.BlockSpec((1, S, D), lambda b, l, qi: (b, 0, 0))

    kernel = functools.partial(_fused_encoder_kernel, num_heads=H,
                               q_block=q_block, ff_block=ff_block)

    return pl.pallas_call(
        kernel,
        out_shape=jax.ShapeDtypeStruct((B, S, D), x.dtype),
        grid=grid,
        in_specs=in_specs,
        out_specs=out_specs,
        scratch_shapes=[
            pltpu.VMEM((S, D), cdt),     # resident activations
            pltpu.VMEM((S, D), cdt),     # cached K (per layer)
            pltpu.VMEM((S, D), cdt),     # cached V (per layer)
        ],
        compiler_params=pltpu.CompilerParams(
            dimension_semantics=("parallel", "arbitrary", "arbitrary"),
            vmem_limit_bytes=48 * 1024 * 1024,
        ),
    )(x_c, *weights)


# ---------------- pure-JAX reference (PyTorch semantics, f32) --------------
def _ref_layer(x, p, H):
    B, S, D = x.shape
    dh = D // H
    qkv = x @ p["wqkv"] + p["bqkv"][0]                        # (B, S, 3D)
    qkv = qkv.reshape(B, S, H, 3 * dh)
    q, k, v = qkv[..., :dh], qkv[..., dh:2 * dh], qkv[..., 2 * dh:]
    scores = jnp.einsum("bqhd,bkhd->bhqk", q, k) / jnp.sqrt(jnp.float32(dh))
    attn = jax.nn.softmax(scores, axis=-1)
    ctx = jnp.einsum("bhqk,bkhd->bqhd", attn, v).reshape(B, S, D)
    attn_out = ctx @ p["wo"] + p["bo"][0]

    def ln(y, g, b):
        mu = jnp.mean(y, -1, keepdims=True)
        var = jnp.mean((y - mu) ** 2, -1, keepdims=True)
        return (y - mu) / jnp.sqrt(var + 1e-5) * g[0] + b[0]

    x1 = ln(x + attn_out, p["ln1g"], p["ln1b"])
    ff = jax.nn.relu(x1 @ p["w1"] + p["b1"][0]) @ p["w2"] + p["b2"][0]
    return ln(x1 + ff, p["ln2g"], p["ln2b"])


def init_params(key, num_layers, D, FF):
    params = []
    for _ in range(num_layers):
        key, k0, k1, k2, k3, k4, k5, k6, k7 = jax.random.split(key, 9)
        s = 0.05
        params.append(dict(
            wqkv=jax.random.normal(k0, (D, 3 * D), jnp.float32) * s,
            bqkv=jax.random.normal(k1, (1, 3 * D), jnp.float32) * s,
            wo=jax.random.normal(k2, (D, D), jnp.float32) * s,
            bo=jax.random.normal(k3, (1, D), jnp.float32) * s,
            ln1g=jnp.ones((1, D), jnp.float32),
            ln1b=jnp.zeros((1, D), jnp.float32),
            w1=jax.random.normal(k4, (D, FF), jnp.float32) * s,
            b1=jax.random.normal(k5, (1, FF), jnp.float32) * s,
            w2=jax.random.normal(k6, (FF, D), jnp.float32) * s,
            b2=jax.random.normal(k7, (1, D), jnp.float32) * s,
            ln2g=jnp.ones((1, D), jnp.float32),
            ln2b=jnp.zeros((1, D), jnp.float32),
        ))
    return params


if __name__ == "__main__":
    # Small shapes; S=16 with q_block=8 exercises the multi-q-tile + KV-cache
    # path, NUM_LAYERS=2 exercises the fused layer axis.
    B, S, D, H, FF = 2, 16, 32, 4, 64
    NUM_LAYERS = 2

    key = jax.random.PRNGKey(0)
    kx, kp = jax.random.split(key)
    x = jax.random.normal(kx, (B, S, D), jnp.float32)
    params = init_params(kp, NUM_LAYERS, D, FF)

    out = transformer_encoder(x, params, num_heads=H, q_block=8)
    out = jax.block_until_ready(out)

    ref = x
    for p in params:
        ref = _ref_layer(ref, p, H)

    assert out.shape == (B, S, D) and out.dtype == x.dtype
    # bf16 matmul operands + approx softmax reciprocal -> compare loosely
    # against the exact f32 reference.
    err = float(jnp.max(jnp.abs(out - ref)))
    assert err < 5e-2, f"mismatch vs JAX reference: max abs err {err}"

    print("KERNEL_OK")
</pallas_src>

<mosaic_0001>
module attributes {stable_mosaic.version = 11 : i64} {
  func.func @_fused_encoder_kernel(%arg0: i32, %arg1: i32, %arg2: i32, %arg3: memref<1x16x32xbf16, #tpu.memory_space<vmem>>, %arg4: memref<1x32x32xbf16, #tpu.memory_space<vmem>>, %arg5: memref<1x32x32xbf16, #tpu.memory_space<vmem>>, %arg6: memref<1x32x32xbf16, #tpu.memory_space<vmem>>, %arg7: memref<1x1x32xf32, #tpu.memory_space<vmem>>, %arg8: memref<1x1x32xf32, #tpu.memory_space<vmem>>, %arg9: memref<1x1x32xf32, #tpu.memory_space<vmem>>, %arg10: memref<1x32x32xbf16, #tpu.memory_space<vmem>>, %arg11: memref<1x1x32xf32, #tpu.memory_space<vmem>>, %arg12: memref<1x1x32xf32, #tpu.memory_space<vmem>>, %arg13: memref<1x1x32xf32, #tpu.memory_space<vmem>>, %arg14: memref<1x32x64xbf16, #tpu.memory_space<vmem>>, %arg15: memref<1x1x64xf32, #tpu.memory_space<vmem>>, %arg16: memref<1x64x32xbf16, #tpu.memory_space<vmem>>, %arg17: memref<1x1x32xf32, #tpu.memory_space<vmem>>, %arg18: memref<1x1x32xf32, #tpu.memory_space<vmem>>, %arg19: memref<1x1x32xf32, #tpu.memory_space<vmem>>, %arg20: memref<1x16x32xf32, #tpu.memory_space<vmem>>, %arg21: memref<16x32xbf16, #tpu.memory_space<vmem>>, %arg22: memref<16x32xbf16, #tpu.memory_space<vmem>>, %arg23: memref<16x32xbf16, #tpu.memory_space<vmem>>) attributes {dimension_semantics = [#tpu.dimension_semantics<parallel>, #tpu.dimension_semantics<arbitrary>, #tpu.dimension_semantics<arbitrary>], iteration_bounds = array<i64: 2, 2, 2>, scalar_prefetch = 0 : i64, scratch_operands = 3 : i64, tpu.core_type = #tpu.core_type<tc>, window_params = [{transform_indices = @transform_0, window_bounds = array<i64: 1, 16, 32>}, {transform_indices = @transform_1, window_bounds = array<i64: 1, 32, 32>}, {transform_indices = @transform_2, window_bounds = array<i64: 1, 32, 32>}, {transform_indices = @transform_3, window_bounds = array<i64: 1, 32, 32>}, {transform_indices = @transform_4, window_bounds = array<i64: 1, 1, 32>}, {transform_indices = @transform_5, window_bounds = array<i64: 1, 1, 32>}, {transform_indices = @transform_6, window_bounds = array<i64: 1, 1, 32>}, {transform_indices = @transform_7, window_bounds = array<i64: 1, 32, 32>}, {transform_indices = @transform_8, window_bounds = array<i64: 1, 1, 32>}, {transform_indices = @transform_9, window_bounds = array<i64: 1, 1, 32>}, {transform_indices = @transform_10, window_bounds = array<i64: 1, 1, 32>}, {transform_indices = @transform_11, window_bounds = array<i64: 1, 32, 64>}, {transform_indices = @transform_12, window_bounds = array<i64: 1, 1, 64>}, {transform_indices = @transform_13, window_bounds = array<i64: 1, 64, 32>}, {transform_indices = @transform_14, window_bounds = array<i64: 1, 1, 32>}, {transform_indices = @transform_15, window_bounds = array<i64: 1, 1, 32>}, {transform_indices = @transform_16, window_bounds = array<i64: 1, 1, 32>}, {transform_indices = @transform_17, window_bounds = array<i64: 1, 16, 32>}]} {
    %c0_i32 = arith.constant 0 : i32
    %0 = arith.cmpi eq, %arg1, %c0_i32 : i32
    %c0_i32_0 = arith.constant 0 : i32
    %1 = arith.cmpi eq, %arg2, %c0_i32_0 : i32
    %2 = arith.andi %0, %1 : i1
    %3 = arith.extui %2 : i1 to i32
    %c0_i32_1 = arith.constant 0 : i32
    %4 = arith.cmpi ne, %3, %c0_i32_1 : i32
    scf.if %4 {
      %c0_66 = arith.constant 0 : index
      %c0_67 = arith.constant 0 : index
      %c0_68 = arith.constant 0 : index
      %135 = vector.load %arg3[%c0_66, %c0_67, %c0_68] : memref<1x16x32xbf16, #tpu.memory_space<vmem>>, vector<1x16x32xbf16>
      %136 = vector.shape_cast %135 : vector<1x16x32xbf16> to vector<16x32xbf16>
      %c0_69 = arith.constant 0 : index
      %c0_70 = arith.constant 0 : index
      %137 = vector.load %arg21[%c0_69, %c0_70] : memref<16x32xbf16, #tpu.memory_space<vmem>>, vector<16x32xbf16>
      tpu.vector_store %arg21[%c0_69, %c0_70], %136 {strides = array<i32>} : memref<16x32xbf16, #tpu.memory_space<vmem>>, vector<16x32xbf16>,
    } else {
    }
    %c0_i32_2 = arith.constant 0 : i32
    %5 = arith.cmpi eq, %arg2, %c0_i32_2 : i32
    %6 = arith.extui %5 : i1 to i32
    %c0_i32_3 = arith.constant 0 : i32
    %7 = arith.cmpi ne, %6, %c0_i32_3 : i32
    scf.if %7 {
      %c0_66 = arith.constant 0 : index
      %c0_67 = arith.constant 0 : index
      %135 = vector.load %arg21[%c0_66, %c0_67] : memref<16x32xbf16, #tpu.memory_space<vmem>>, vector<16x32xbf16>
      %c0_68 = arith.constant 0 : index
      %c0_69 = arith.constant 0 : index
      %c0_70 = arith.constant 0 : index
      %136 = vector.load %arg5[%c0_68, %c0_69, %c0_70] : memref<1x32x32xbf16, #tpu.memory_space<vmem>>, vector<1x32x32xbf16>
      %137 = vector.shape_cast %136 : vector<1x32x32xbf16> to vector<32x32xbf16>
      %cst_71 = arith.constant dense<0.000000e+00> : vector<16x32xf32>
      %138 = tpu.matmul %135, %137, %cst_71 {dimension_numbers = #tpu.dot_dimension_numbers<[1], [0], [0], [1], [0, 0, 1, 1], [], []>} : vector<16x32xbf16>, vector<32x32xbf16>, vector<16x32xf32> -> vector<16x32xf32>
      %c0_72 = arith.constant 0 : index
      %c0_73 = arith.constant 0 : index
      %c0_74 = arith.constant 0 : index
      %139 = vector.load %arg8[%c0_72, %c0_73, %c0_74] : memref<1x1x32xf32, #tpu.memory_space<vmem>>, vector<1x1x32xf32>
      %140 = vector.shape_cast %139 : vector<1x1x32xf32> to vector<1x32xf32>
      %141 = vector.broadcast %140 : vector<1x32xf32> to vector<16x32xf32>
      %142 = arith.addf %138, %141 : vector<16x32xf32>
      %143 = arith.truncf %142 : vector<16x32xf32> to vector<16x32xbf16>
      %c0_75 = arith.constant 0 : index
      %c0_76 = arith.constant 0 : index
      %144 = vector.load %arg22[%c0_75, %c0_76] : memref<16x32xbf16, #tpu.memory_space<vmem>>, vector<16x32xbf16>
      tpu.vector_store %arg22[%c0_75, %c0_76], %143 {strides = array<i32>} : memref<16x32xbf16, #tpu.memory_space<vmem>>, vector<16x32xbf16>,
      %c0_77 = arith.constant 0 : index
      %c0_78 = arith.constant 0 : index
      %c0_79 = arith.constant 0 : index
      %145 = vector.load %arg6[%c0_77, %c0_78, %c0_79] : memref<1x32x32xbf16, #tpu.memory_space<vmem>>, vector<1x32x32xbf16>
      %146 = vector.shape_cast %145 : vector<1x32x32xbf16> to vector<32x32xbf16>
      %cst_80 = arith.constant dense<0.000000e+00> : vector<16x32xf32>
      %147 = tpu.matmul %135, %146, %cst_80 {dimension_numbers = #tpu.dot_dimension_numbers<[1], [0], [0], [1], [0, 0, 1, 1], [], []>} : vector<16x32xbf16>, vector<32x32xbf16>, vector<16x32xf32> -> vector<16x32xf32>
      %c0_81 = arith.constant 0 : index
      %c0_82 = arith.constant 0 : index
      %c0_83 = arith.constant 0 : index
      %148 = vector.load %arg9[%c0_81, %c0_82, %c0_83] : memref<1x1x32xf32, #tpu.memory_space<vmem>>, vector<1x1x32xf32>
      %149 = vector.shape_cast %148 : vector<1x1x32xf32> to vector<1x32xf32>
      %150 = vector.broadcast %149 : vector<1x32xf32> to vector<16x32xf32>
      %151 = arith.addf %147, %150 : vector<16x32xf32>
      %152 = arith.truncf %151 : vector<16x32xf32> to vector<16x32xbf16>
      %c0_84 = arith.constant 0 : index
      %c0_85 = arith.constant 0 : index
      %153 = vector.load %arg23[%c0_84, %c0_85] : memref<16x32xbf16, #tpu.memory_space<vmem>>, vector<16x32xbf16>
      tpu.vector_store %arg23[%c0_84, %c0_85], %152 {strides = array<i32>} : memref<16x32xbf16, #tpu.memory_space<vmem>>, vector<16x32xbf16>,
    } else {
    }
    %c8_i32 = arith.constant 8 : i32
    %8 = arith.muli %arg2, %c8_i32 : i32
    %9 = tpu.assume_multiple %8, 8 : i32
    %10 = arith.index_cast %9 : i32 to index
    %c0 = arith.constant 0 : index
    %11 = vector.load %arg21[%10, %c0] : memref<16x32xbf16, #tpu.memory_space<vmem>>, vector<8x32xbf16>
    %c0_4 = arith.constant 0 : index
    %c0_5 = arith.constant 0 : index
    %c0_6 = arith.constant 0 : index
    %12 = vector.load %arg4[%c0_4, %c0_5, %c0_6] : memref<1x32x32xbf16, #tpu.memory_space<vmem>>, vector<1x32x32xbf16>
    %13 = vector.shape_cast %12 : vector<1x32x32xbf16> to vector<32x32xbf16>
    %cst = arith.constant dense<0.000000e+00> : vector<8x32xf32>
    %14 = tpu.matmul %11, %13, %cst {dimension_numbers = #tpu.dot_dimension_numbers<[1], [0], [0], [1], [0, 0, 1, 1], [], []>} : vector<8x32xbf16>, vector<32x32xbf16>, vector<8x32xf32> -> vector<8x32xf32>
    %c0_7 = arith.constant 0 : index
    %c0_8 = arith.constant 0 : index
    %c0_9 = arith.constant 0 : index
    %15 = vector.load %arg7[%c0_7, %c0_8, %c0_9] : memref<1x1x32xf32, #tpu.memory_space<vmem>>, vector<1x1x32xf32>
    %16 = vector.shape_cast %15 : vector<1x1x32xf32> to vector<1x32xf32>
    %17 = vector.broadcast %16 : vector<1x32xf32> to vector<8x32xf32>
    %18 = arith.addf %14, %17 : vector<8x32xf32>
    %19 = arith.truncf %18 : vector<8x32xf32> to vector<8x32xbf16>
    %20 = vector.shape_cast %19 : vector<8x32xbf16> to vector<8x4x8xbf16>
    %c0_10 = arith.constant 0 : index
    %c0_11 = arith.constant 0 : index
    %21 = vector.load %arg22[%c0_10, %c0_11] : memref<16x32xbf16, #tpu.memory_space<vmem>>, vector<16x32xbf16>
    %22 = vector.shape_cast %21 : vector<16x32xbf16> to vector<16x4x8xbf16>
    %c0_12 = arith.constant 0 : index
    %c0_13 = arith.constant 0 : index
    %23 = vector.load %arg23[%c0_12, %c0_13] : memref<16x32xbf16, #tpu.memory_space<vmem>>, vector<16x32xbf16>
    %24 = vector.shape_cast %23 : vector<16x32xbf16> to vector<16x4x8xbf16>
    "tpu.trace_start"() <{level = 10 : i32, message = "qhd,khd->hqk"}> : () -> ()
    %cst_14 = arith.constant dense<0.000000e+00> : vector<4x8x16xf32>
    %25 = tpu.matmul %20, %22, %cst_14 {dimension_numbers = #tpu.dot_dimension_numbers<[2], [2], [0], [0], [0, 1, 0, 0, 1, 0], [1], [1]>} : vector<8x4x8xbf16>, vector<16x4x8xbf16>, vector<4x8x16xf32> -> vector<4x8x16xf32>
    "tpu.trace_stop"() : () -> ()
    %cst_15 = arith.constant 0.353553385 : f32
    %26 = vector.broadcast %cst_15 : f32 to vector<4x8x16xf32>
    %27 = arith.mulf %25, %26 : vector<4x8x16xf32>
    %cst_16 = arith.constant dense<0xFF800000> : vector<4x8xf32>
    %28 = vector.multi_reduction <maximumf>, %27, %cst_16 [2] : vector<4x8x16xf32> to vector<4x8xf32>
    %29 = vector.shape_cast %28 : vector<4x8xf32> to vector<4x8x1xf32>
    %30 = vector.broadcast %29 : vector<4x8x1xf32> to vector<4x8x16xf32>
    %31 = arith.subf %27, %30 : vector<4x8x16xf32>
    %32 = math.exp %31 : vector<4x8x16xf32>
    %cst_17 = arith.constant dense<0.000000e+00> : vector<4x8xf32>
    %33 = vector.multi_reduction <add>, %32, %cst_17 [2] : vector<4x8x16xf32> to vector<4x8xf32>
    %34 = vector.shape_cast %33 : vector<4x8xf32> to vector<4x8x1xf32>
    %35 = tpu.reciprocal %34 {approx = true} : vector<4x8x1xf32> -> vector<4x8x1xf32>
    %36 = vector.broadcast %35 : vector<4x8x1xf32> to vector<4x8x16xf32>
    %37 = arith.mulf %32, %36 : vector<4x8x16xf32>
    %38 = arith.truncf %37 : vector<4x8x16xf32> to vector<4x8x16xbf16>
    "tpu.trace_start"() <{level = 10 : i32, message = "hqk,khd->qhd"}> : () -> ()
    %cst_18 = arith.constant dense<0.000000e+00> : vector<4x8x8xf32>
    %39 = tpu.matmul %24, %38, %cst_18 {dimension_numbers = #tpu.dot_dimension_numbers<[0], [2], [2], [1], [0, 1, 0, 2, 1, 1], [1], [0]>} : vector<16x4x8xbf16>, vector<4x8x16xbf16>, vector<4x8x8xf32> -> vector<4x8x8xf32>
    %40 = tpu.transpose %39, [2, 0, 1] : vector<4x8x8xf32> -> vector<8x4x8xf32>
    "tpu.trace_stop"() : () -> ()
    %41 = vector.shape_cast %40 : vector<8x4x8xf32> to vector<8x32xf32>
    %42 = arith.truncf %41 : vector<8x32xf32> to vector<8x32xbf16>
    %c0_19 = arith.constant 0 : index
    %c0_20 = arith.constant 0 : index
    %c0_21 = arith.constant 0 : index
    %43 = vector.load %arg10[%c0_19, %c0_20, %c0_21] : memref<1x32x32xbf16, #tpu.memory_space<vmem>>, vector<1x32x32xbf16>
    %44 = vector.shape_cast %43 : vector<1x32x32xbf16> to vector<32x32xbf16>
    %cst_22 = arith.constant dense<0.000000e+00> : vector<8x32xf32>
    %45 = tpu.matmul %42, %44, %cst_22 {dimension_numbers = #tpu.dot_dimension_numbers<[1], [0], [0], [1], [0, 0, 1, 1], [], []>} : vector<8x32xbf16>, vector<32x32xbf16>, vector<8x32xf32> -> vector<8x32xf32>
    %c0_23 = arith.constant 0 : index
    %c0_24 = arith.constant 0 : index
    %c0_25 = arith.constant 0 : index
    %46 = vector.load %arg11[%c0_23, %c0_24, %c0_25] : memref<1x1x32xf32, #tpu.memory_space<vmem>>, vector<1x1x32xf32>
    %47 = vector.shape_cast %46 : vector<1x1x32xf32> to vector<1x32xf32>
    %48 = vector.broadcast %47 : vector<1x32xf32> to vector<8x32xf32>
    %49 = arith.addf %45, %48 : vector<8x32xf32>
    %50 = arith.extf %11 : vector<8x32xbf16> to vector<8x32xf32>
    %51 = arith.addf %50, %49 : vector<8x32xf32>
    %c0_26 = arith.constant 0 : index
    %c0_27 = arith.constant 0 : index
    %c0_28 = arith.constant 0 : index
    %52 = vector.load %arg12[%c0_26, %c0_27, %c0_28] : memref<1x1x32xf32, #tpu.memory_space<vmem>>, vector<1x1x32xf32>
    %53 = vector.shape_cast %52 : vector<1x1x32xf32> to vector<1x32xf32>
    %c0_29 = arith.constant 0 : index
    %c0_30 = arith.constant 0 : index
    %c0_31 = arith.constant 0 : index
    %54 = vector.load %arg13[%c0_29, %c0_30, %c0_31] : memref<1x1x32xf32, #tpu.memory_space<vmem>>, vector<1x1x32xf32>
    %55 = vector.shape_cast %54 : vector<1x1x32xf32> to vector<1x32xf32>
    %cst_32 = arith.constant dense<0.000000e+00> : vector<8xf32>
    %56 = vector.multi_reduction <add>, %51, %cst_32 [1] : vector<8x32xf32> to vector<8xf32>
    %57 = vector.shape_cast %56 : vector<8xf32> to vector<8x1xf32>
    %cst_33 = arith.constant 3.200000e+01 : f32
    %58 = vector.broadcast %cst_33 : f32 to vector<8x1xf32>
    %59 = arith.divf %57, %58 : vector<8x1xf32>
    %60 = vector.broadcast %59 : vector<8x1xf32> to vector<8x32xf32>
    %61 = arith.subf %51, %60 : vector<8x32xf32>
    %62 = vector.broadcast %59 : vector<8x1xf32> to vector<8x32xf32>
    %63 = arith.subf %51, %62 : vector<8x32xf32>
    %64 = arith.mulf %61, %63 : vector<8x32xf32>
    %cst_34 = arith.constant dense<0.000000e+00> : vector<8xf32>
    %65 = vector.multi_reduction <add>, %64, %cst_34 [1] : vector<8x32xf32> to vector<8xf32>
    %66 = vector.shape_cast %65 : vector<8xf32> to vector<8x1xf32>
    %cst_35 = arith.constant 3.200000e+01 : f32
    %67 = vector.broadcast %cst_35 : f32 to vector<8x1xf32>
    %68 = arith.divf %66, %67 : vector<8x1xf32>
    %cst_36 = arith.constant 9.99999974E-6 : f32
    %69 = vector.broadcast %cst_36 : f32 to vector<8x1xf32>
    %70 = arith.addf %68, %69 : vector<8x1xf32>
    %71 = math.rsqrt %70 : vector<8x1xf32>
    %72 = vector.broadcast %59 : vector<8x1xf32> to vector<8x32xf32>
    %73 = arith.subf %51, %72 : vector<8x32xf32>
    %74 = vector.broadcast %71 : vector<8x1xf32> to vector<8x32xf32>
    %75 = arith.mulf %73, %74 : vector<8x32xf32>
    %76 = vector.broadcast %53 : vector<1x32xf32> to vector<8x32xf32>
    %77 = arith.mulf %75, %76 : vector<8x32xf32>
    %78 = vector.broadcast %55 : vector<1x32xf32> to vector<8x32xf32>
    %79 = arith.addf %77, %78 : vector<8x32xf32>
    %80 = arith.truncf %79 : vector<8x32xf32> to vector<8x32xbf16>
    %cst_37 = arith.constant 0.000000e+00 : f32
    %81 = vector.broadcast %cst_37 : f32 to vector<8x32xf32>
    %c0_38 = arith.constant 0 : index
    %c0_39 = arith.constant 0 : index
    %c0_40 = arith.constant 0 : index
    %82 = vector.load %arg14[%c0_38, %c0_39, %c0_40] : memref<1x32x64xbf16, #tpu.memory_space<vmem>>, vector<1x32x64xbf16>
    %83 = vector.shape_cast %82 : vector<1x32x64xbf16> to vector<32x64xbf16>
    %cst_41 = arith.constant dense<0.000000e+00> : vector<8x64xf32>
    %84 = tpu.matmul %80, %83, %cst_41 {dimension_numbers = #tpu.dot_dimension_numbers<[1], [0], [0], [1], [0, 0, 1, 1], [], []>} : vector<8x32xbf16>, vector<32x64xbf16>, vector<8x64xf32> -> vector<8x64xf32>
    %c0_42 = arith.constant 0 : index
    %c0_43 = arith.constant 0 : index
    %c0_44 = arith.constant 0 : index
    %85 = vector.load %arg15[%c0_42, %c0_43, %c0_44] : memref<1x1x64xf32, #tpu.memory_space<vmem>>, vector<1x1x64xf32>
    %86 = vector.shape_cast %85 : vector<1x1x64xf32> to vector<1x64xf32>
    %87 = vector.broadcast %86 : vector<1x64xf32> to vector<8x64xf32>
    %88 = arith.addf %84, %87 : vector<8x64xf32>
    %cst_45 = arith.constant 0.000000e+00 : f32
    %89 = vector.broadcast %cst_45 : f32 to vector<8x64xf32>
    %90 = arith.maximumf %88, %89 : vector<8x64xf32>
    %91 = arith.truncf %90 : vector<8x64xf32> to vector<8x64xbf16>
    %c0_46 = arith.constant 0 : index
    %c0_47 = arith.constant 0 : index
    %c0_48 = arith.constant 0 : index
    %92 = vector.load %arg16[%c0_46, %c0_47, %c0_48] : memref<1x64x32xbf16, #tpu.memory_space<vmem>>, vector<1x64x32xbf16>
    %93 = vector.shape_cast %92 : vector<1x64x32xbf16> to vector<64x32xbf16>
    %cst_49 = arith.constant dense<0.000000e+00> : vector<8x32xf32>
    %94 = tpu.matmul %91, %93, %cst_49 {dimension_numbers = #tpu.dot_dimension_numbers<[1], [0], [0], [1], [0, 0, 1, 1], [], []>} : vector<8x64xbf16>, vector<64x32xbf16>, vector<8x32xf32> -> vector<8x32xf32>
    %95 = arith.addf %81, %94 : vector<8x32xf32>
    %c0_50 = arith.constant 0 : index
    %c0_51 = arith.constant 0 : index
    %c0_52 = arith.constant 0 : index
    %96 = vector.load %arg17[%c0_50, %c0_51, %c0_52] : memref<1x1x32xf32, #tpu.memory_space<vmem>>, vector<1x1x32xf32>
    %97 = vector.shape_cast %96 : vector<1x1x32xf32> to vector<1x32xf32>
    %98 = vector.broadcast %97 : vector<1x32xf32> to vector<8x32xf32>
    %99 = arith.addf %95, %98 : vector<8x32xf32>
    %100 = arith.addf %79, %99 : vector<8x32xf32>
    %c0_53 = arith.constant 0 : index
    %c0_54 = arith.constant 0 : index
    %c0_55 = arith.constant 0 : index
    %101 = vector.load %arg18[%c0_53, %c0_54, %c0_55] : memref<1x1x32xf32, #tpu.memory_space<vmem>>, vector<1x1x32xf32>
    %102 = vector.shape_cast %101 : vector<1x1x32xf32> to vector<1x32xf32>
    %c0_56 = arith.constant 0 : index
    %c0_57 = arith.constant 0 : index
    %c0_58 = arith.constant 0 : index
    %103 = vector.load %arg19[%c0_56, %c0_57, %c0_58] : memref<1x1x32xf32, #tpu.memory_space<vmem>>, vector<1x1x32xf32>
    %104 = vector.shape_cast %103 : vector<1x1x32xf32> to vector<1x32xf32>
    %cst_59 = arith.constant dense<0.000000e+00> : vector<8xf32>
    %105 = vector.multi_reduction <add>, %100, %cst_59 [1] : vector<8x32xf32> to vector<8xf32>
    %106 = vector.shape_cast %105 : vector<8xf32> to vector<8x1xf32>
    %cst_60 = arith.constant 3.200000e+01 : f32
    %107 = vector.broadcast %cst_60 : f32 to vector<8x1xf32>
    %108 = arith.divf %106, %107 : vector<8x1xf32>
    %109 = vector.broadcast %108 : vector<8x1xf32> to vector<8x32xf32>
    %110 = arith.subf %100, %109 : vector<8x32xf32>
    %111 = vector.broadcast %108 : vector<8x1xf32> to vector<8x32xf32>
    %112 = arith.subf %100, %111 : vector<8x32xf32>
    %113 = arith.mulf %110, %112 : vector<8x32xf32>
    %cst_61 = arith.constant dense<0.000000e+00> : vector<8xf32>
    %114 = vector.multi_reduction <add>, %113, %cst_61 [1] : vector<8x32xf32> to vector<8xf32>
    %115 = vector.shape_cast %114 : vector<8xf32> to vector<8x1xf32>
    %cst_62 = arith.constant 3.200000e+01 : f32
    %116 = vector.broadcast %cst_62 : f32 to vector<8x1xf32>
    %117 = arith.divf %115, %116 : vector<8x1xf32>
    %cst_63 = arith.constant 9.99999974E-6 : f32
    %118 = vector.broadcast %cst_63 : f32 to vector<8x1xf32>
    %119 = arith.addf %117, %118 : vector<8x1xf32>
    %120 = math.rsqrt %119 : vector<8x1xf32>
    %121 = vector.broadcast %108 : vector<8x1xf32> to vector<8x32xf32>
    %122 = arith.subf %100, %121 : vector<8x32xf32>
    %123 = vector.broadcast %120 : vector<8x1xf32> to vector<8x32xf32>
    %124 = arith.mulf %122, %123 : vector<8x32xf32>
    %125 = vector.broadcast %102 : vector<1x32xf32> to vector<8x32xf32>
    %126 = arith.mulf %124, %125 : vector<8x32xf32>
    %127 = vector.broadcast %104 : vector<1x32xf32> to vector<8x32xf32>
    %128 = arith.addf %126, %127 : vector<8x32xf32>
    %129 = arith.truncf %128 : vector<8x32xf32> to vector<8x32xbf16>
    %130 = arith.index_cast %9 : i32 to index
    %c0_64 = arith.constant 0 : index
    %131 = vector.load %arg21[%130, %c0_64] : memref<16x32xbf16, #tpu.memory_space<vmem>>, vector<8x32xbf16>
    tpu.vector_store %arg21[%130, %c0_64], %129 {strides = array<i32>} : memref<16x32xbf16, #tpu.memory_space<vmem>>, vector<8x32xbf16>,
    %c1_i32 = arith.constant 1 : i32
    %132 = arith.cmpi eq, %arg1, %c1_i32 : i32
    %133 = arith.extui %132 : i1 to i32
    %c0_i32_65 = arith.constant 0 : i32
    %134 = arith.cmpi ne, %133, %c0_i32_65 : i32
    scf.if %134 {
      %c0_66 = arith.constant 0 : index
      %135 = arith.index_cast %9 : i32 to index
      %c0_67 = arith.constant 0 : index
      %136 = vector.load %arg20[%c0_66, %135, %c0_67] : memref<1x16x32xf32, #tpu.memory_space<vmem>>, vector<1x8x32xf32>
      %137 = vector.shape_cast %136 : vector<1x8x32xf32> to vector<8x32xf32>
      %138 = vector.shape_cast %128 : vector<8x32xf32> to vector<1x8x32xf32>
      tpu.vector_store %arg20[%c0_66, %135, %c0_67], %138 {strides = array<i32>} : memref<1x16x32xf32, #tpu.memory_space<vmem>>, vector<1x8x32xf32>,
    } else {
    }
    return
  }
  func.func @transform_0(%arg0: i32, %arg1: i32, %arg2: i32) -> (i32, i32, i32) {
    %c0_i32 = arith.constant 0 : i32
    %c0_i32_0 = arith.constant 0 : i32
    %c0_i32_1 = arith.constant 0 : i32
    return %arg0, %c0_i32, %c0_i32_0 : i32, i32, i32
  }
  func.func @transform_1(%arg0: i32, %arg1: i32, %arg2: i32) -> (i32, i32, i32) {
    %c0_i32 = arith.constant 0 : i32
    %c0_i32_0 = arith.constant 0 : i32
    %c0_i32_1 = arith.constant 0 : i32
    return %arg1, %c0_i32, %c0_i32_0 : i32, i32, i32
  }
  func.func @transform_2(%arg0: i32, %arg1: i32, %arg2: i32) -> (i32, i32, i32) {
    %c0_i32 = arith.constant 0 : i32
    %c0_i32_0 = arith.constant 0 : i32
    %c0_i32_1 = arith.constant 0 : i32
    return %arg1, %c0_i32, %c0_i32_0 : i32, i32, i32
  }
  func.func @transform_3(%arg0: i32, %arg1: i32, %arg2: i32) -> (i32, i32, i32) {
    %c0_i32 = arith.constant 0 : i32
    %c0_i32_0 = arith.constant 0 : i32
    %c0_i32_1 = arith.constant 0 : i32
    return %arg1, %c0_i32, %c0_i32_0 : i32, i32, i32
  }
  func.func @transform_4(%arg0: i32, %arg1: i32, %arg2: i32) -> (i32, i32, i32) {
    %c0_i32 = arith.constant 0 : i32
    %c0_i32_0 = arith.constant 0 : i32
    %c0_i32_1 = arith.constant 0 : i32
    return %arg1, %c0_i32, %c0_i32_0 : i32, i32, i32
  }
  func.func @transform_5(%arg0: i32, %arg1: i32, %arg2: i32) -> (i32, i32, i32) {
    %c0_i32 = arith.constant 0 : i32
    %c0_i32_0 = arith.constant 0 : i32
    %c0_i32_1 = arith.constant 0 : i32
    return %arg1, %c0_i32, %c0_i32_0 : i32, i32, i32
  }
  func.func @transform_6(%arg0: i32, %arg1: i32, %arg2: i32) -> (i32, i32, i32) {
    %c0_i32 = arith.constant 0 : i32
    %c0_i32_0 = arith.constant 0 : i32
    %c0_i32_1 = arith.constant 0 : i32
    return %arg1, %c0_i32, %c0_i32_0 : i32, i32, i32
  }
  func.func @transform_7(%arg0: i32, %arg1: i32, %arg2: i32) -> (i32, i32, i32) {
    %c0_i32 = arith.constant 0 : i32
    %c0_i32_0 = arith.constant 0 : i32
    %c0_i32_1 = arith.constant 0 : i32
    return %arg1, %c0_i32, %c0_i32_0 : i32, i32, i32
  }
  func.func @transform_8(%arg0: i32, %arg1: i32, %arg2: i32) -> (i32, i32, i32) {
    %c0_i32 = arith.constant 0 : i32
    %c0_i32_0 = arith.constant 0 : i32
    %c0_i32_1 = arith.constant 0 : i32
    return %arg1, %c0_i32, %c0_i32_0 : i32, i32, i32
  }
  func.func @transform_9(%arg0: i32, %arg1: i32, %arg2: i32) -> (i32, i32, i32) {
    %c0_i32 = arith.constant 0 : i32
    %c0_i32_0 = arith.constant 0 : i32
    %c0_i32_1 = arith.constant 0 : i32
    return %arg1, %c0_i32, %c0_i32_0 : i32, i32, i32
  }
  func.func @transform_10(%arg0: i32, %arg1: i32, %arg2: i32) -> (i32, i32, i32) {
    %c0_i32 = arith.constant 0 : i32
    %c0_i32_0 = arith.constant 0 : i32
    %c0_i32_1 = arith.constant 0 : i32
    return %arg1, %c0_i32, %c0_i32_0 : i32, i32, i32
  }
  func.func @transform_11(%arg0: i32, %arg1: i32, %arg2: i32) -> (i32, i32, i32) {
    %c0_i32 = arith.constant 0 : i32
    %c0_i32_0 = arith.constant 0 : i32
    %c0_i32_1 = arith.constant 0 : i32
    return %arg1, %c0_i32, %c0_i32_0 : i32, i32, i32
  }
  func.func @transform_12(%arg0: i32, %arg1: i32, %arg2: i32) -> (i32, i32, i32) {
    %c0_i32 = arith.constant 0 : i32
    %c0_i32_0 = arith.constant 0 : i32
    %c0_i32_1 = arith.constant 0 : i32
    return %arg1, %c0_i32, %c0_i32_0 : i32, i32, i32
  }
  func.func @transform_13(%arg0: i32, %arg1: i32, %arg2: i32) -> (i32, i32, i32) {
    %c0_i32 = arith.constant 0 : i32
    %c0_i32_0 = arith.constant 0 : i32
    %c0_i32_1 = arith.constant 0 : i32
    return %arg1, %c0_i32, %c0_i32_0 : i32, i32, i32
  }
  func.func @transform_14(%arg0: i32, %arg1: i32, %arg2: i32) -> (i32, i32, i32) {
    %c0_i32 = arith.constant 0 : i32
    %c0_i32_0 = arith.constant 0 : i32
    %c0_i32_1 = arith.constant 0 : i32
    return %arg1, %c0_i32, %c0_i32_0 : i32, i32, i32
  }
  func.func @transform_15(%arg0: i32, %arg1: i32, %arg2: i32) -> (i32, i32, i32) {
    %c0_i32 = arith.constant 0 : i32
    %c0_i32_0 = arith.constant 0 : i32
    %c0_i32_1 = arith.constant 0 : i32
    return %arg1, %c0_i32, %c0_i32_0 : i32, i32, i32
  }
  func.func @transform_16(%arg0: i32, %arg1: i32, %arg2: i32) -> (i32, i32, i32) {
    %c0_i32 = arith.constant 0 : i32
    %c0_i32_0 = arith.constant 0 : i32
    %c0_i32_1 = arith.constant 0 : i32
    return %arg1, %c0_i32, %c0_i32_0 : i32, i32, i32
  }
  func.func @transform_17(%arg0: i32, %arg1: i32, %arg2: i32) -> (i32, i32, i32) {
    %c0_i32 = arith.constant 0 : i32
    %c0_i32_0 = arith.constant 0 : i32
    %c0_i32_1 = arith.constant 0 : i32
    return %arg0, %c0_i32, %c0_i32_0 : i32, i32, i32
  }
}

</mosaic_0001>

<llo_original>
// kernel: tpu_custom_call.1
$region0: #{tpu_custom_call.1}
  #allocation0 [shape = 'u32[]', space=smem, size = 0x4, offset = 0x4, fixed_abs, tag = 'smem constant byte address 0x4 - core index']
  #allocation1 [shape = 'u32[72,128]{1,0:T(1,128)}', space=vmem, size = 0x9000, scoped, tag = 'internal scratch']
  #allocation2 [shape = 'bf16[16,32]{1,0:T(8,128)(2,1)}', space=vmem, size = 0x1000, scoped, tag = 'scratch operand']
  #allocation3 [shape = 'bf16[16,32]{1,0:T(8,128)(2,1)}', space=vmem, size = 0x1000, scoped, tag = 'scratch operand']
  #allocation4 [shape = 'bf16[16,32]{1,0:T(8,128)(2,1)}', space=vmem, size = 0x1000, scoped, tag = 'scratch operand']
  %s0 = inlined_call_operand.hbm [shape: bf16[2,16,32], index: 0, kind: input, shape index: {}]
  %s1 = inlined_call_operand.vmem [shape: bf16[2,32,32], index: 1, kind: input, shape index: {}]
  %s2 = inlined_call_operand.vmem [shape: bf16[2,32,32], index: 2, kind: input, shape index: {}]
  %s3 = inlined_call_operand.vmem [shape: bf16[2,32,32], index: 3, kind: input, shape index: {}]
  %s4 = inlined_call_operand.vmem [shape: f32[2,1,32], index: 4, kind: input, shape index: {}]
  %s5 = inlined_call_operand.hbm [shape: f32[2,1,32], index: 5, kind: input, shape index: {}]
  %s6 = inlined_call_operand.vmem [shape: f32[2,1,32], index: 6, kind: input, shape index: {}]
  %s7 = inlined_call_operand.hbm [shape: bf16[2,32,32], index: 7, kind: input, shape index: {}]
  %s8 = inlined_call_operand.vmem [shape: f32[2,1,32], index: 8, kind: input, shape index: {}]
  %s9 = inlined_call_operand.hbm [shape: f32[2,1,32], index: 9, kind: input, shape index: {}]
  %s10 = inlined_call_operand.vmem [shape: f32[2,1,32], index: 10, kind: input, shape index: {}]
  %s11 = inlined_call_operand.hbm [shape: bf16[2,32,64], index: 11, kind: input, shape index: {}]
  %s12 = inlined_call_operand.vmem [shape: f32[2,1,64], index: 12, kind: input, shape index: {}]
  %s13 = inlined_call_operand.vmem [shape: bf16[2,64,32], index: 13, kind: input, shape index: {}]
  %s14 = inlined_call_operand.vmem [shape: f32[2,1,32], index: 14, kind: input, shape index: {}]
  %s15 = inlined_call_operand.hbm [shape: f32[2,1,32], index: 15, kind: input, shape index: {}]
  %s16 = inlined_call_operand.vmem [shape: f32[2,1,32], index: 16, kind: input, shape index: {}]
  %s17 = inlined_call_operand.hbm [shape: f32[2,16,32], index: 17, kind: output, shape index: {}]
  %s18 = sld [smem:[#allocation0]]
  $region137: #{tpu_custom_call.1} parent=0
    _
  %s20 = ssub.s32 1, %s18
  %s21 = scalar_select 0, %s20, %s18
  $region1: #{tpu_custom_call.1} parent=0
    #allocation5 [shape = 'u8[8192]{0}', space=vmem, size = 0x2000, scoped, tag = 'input window, operand 0']
    #allocation6 [shape = 's32[2]{0}', space=sflag, size = 0x8, scoped, tag = 'scoped memory for tpu_custom_call.1']
    #allocation7 [shape = 's32[2]{0}', space=sflag, size = 0x8, scoped, tag = 'scoped memory for tpu_custom_call.1']
    #allocation8 [shape = 'u8[1024]{0}', space=vmem, size = 0x400, scoped, tag = 'input window, operand 5']
    #allocation9 [shape = 's32[2]{0}', space=sflag, size = 0x8, scoped, tag = 'scoped memory for tpu_custom_call.1']
    #allocation10 [shape = 'u8[16384]{0}', space=vmem, size = 0x4000, scoped, tag = 'input window, operand 7']
    #allocation11 [shape = 'u8[1024]{0}', space=vmem, size = 0x400, scoped, tag = 'input window, operand 9']
    #allocation12 [shape = 's32[2]{0}', space=sflag, size = 0x8, scoped, tag = 'scoped memory for tpu_custom_call.1']
    #allocation13 [shape = 'u8[16384]{0}', space=vmem, size = 0x4000, scoped, tag = 'input window, operand 11']
    #allocation14 [shape = 'u8[1024]{0}', space=vmem, size = 0x400, scoped, tag = 'input window, operand 15']
    #allocation15 [shape = 's32[2]{0}', space=sflag, size = 0x8, scoped, tag = 'scoped memory for tpu_custom_call.1']
    #allocation16 [shape = 'u8[16384]{0}', space=vmem, size = 0x4000, scoped, tag = 'output window, operand 0']
    %22 = vsyncpa [#allocation6], 0
    %s23 = scalar_lea.sflag [#allocation6], 1
    %24 = vsyncpa %s23, 0
    %25 = vsyncpa [#allocation9], 0
    %s26 = scalar_lea.sflag [#allocation9], 1
    %27 = vsyncpa %s26, 0
    %28 = vsyncpa [#allocation12], 0
    %s29 = scalar_lea.sflag [#allocation12], 1
    %30 = vsyncpa %s29, 0
    %31 = vsyncpa [#allocation15], 0
    %s32 = scalar_lea.sflag [#allocation15], 1
    %33 = vsyncpa %s32, 0
    %34 = vsyncpa [#allocation7], 0
    %s35 = scalar_lea.sflag [#allocation7], 1
    %36 = vsyncpa %s35, 0
    loop: start=0, step=1, limit=10
    $region2: #{tpu_custom_call.1} parent=1 // loop_pre_header
      _
    $region3: #{tpu_custom_call.1} parent=1 // loop_header
      %s38 = sphi 0, %s42
      %p39 = scmp.ge.s32.totalorder %s38, 10
      %s45 = sphi 0, %s64
      %s46 = sphi 0, %s60
      %s47 = sphi 0, %s56
      %s48 = sphi 0, %s45
      %s49 = sphi 0, %s46
      %s50 = sphi 0, %s47
      %s51 = sphi 0, %s48
      %s52 = sphi 0, %s49
      %s53 = sphi 0, %s50
      %s67 = sphi 0, %s69
      %s70 = sphi 0, %s67
      %s71 = sphi 0, %s70
      %s87 = sphi 0, %s71
      %s93 = sphi 0, %s95
      %s96 = sphi 0, %s93
      %s97 = sphi 0, %s96
      %s113 = sphi 0, %s97
      %s119 = sphi 0, %s121
      %s122 = sphi 0, %s119
      %s123 = sphi 0, %s122
      %s139 = sphi 0, %s123
      %s145 = sphi 0, %s147
      %s148 = sphi 0, %s145
      %s149 = sphi 0, %s148
      %s165 = sphi 0, %s149
      %s171 = sphi 0, %s173
      %s174 = sphi 0, %s171
      %s175 = sphi 0, %s174
      %s191 = sphi 0, %s175
      %s197 = sphi 0, %s199
      %s200 = sphi 0, %s197
      %s201 = sphi 0, %s200
      %s217 = sphi 0, %s201
      %s223 = sphi 0, %s225
      %s226 = sphi 0, %s223
      %s227 = sphi 0, %s226
      %s243 = sphi 0, %s227
      %s249 = sphi 0, %s251
      %s252 = sphi 0, %s249
      %s253 = sphi 0, %s252
      %s269 = sphi 0, %s253
      %s275 = sphi 0, %s277
      %s278 = sphi 0, %s275
      %s279 = sphi 0, %s278
      %s295 = sphi 0, %s279
      %s301 = sphi 0, %s303
      %s304 = sphi 0, %s301
      %s305 = sphi 0, %s304
      %s321 = sphi 0, %s305
      %s327 = sphi 0, %s329
      %s330 = sphi 0, %s327
      %s331 = sphi 0, %s330
      %s347 = sphi 0, %s331
      %s353 = sphi 0, %s355
      %s356 = sphi 0, %s353
      %s357 = sphi 0, %s356
      %s373 = sphi 0, %s357
      %s379 = sphi 0, %s381
      %s382 = sphi 0, %s379
      %s383 = sphi 0, %s382
      %s399 = sphi 0, %s383
      %s405 = sphi 0, %s407
      %s408 = sphi 0, %s405
      %s409 = sphi 0, %s408
      %s425 = sphi 0, %s409
      %s431 = sphi 0, %s433
      %s434 = sphi 0, %s431
      %s435 = sphi 0, %s434
      %s451 = sphi 0, %s435
      %s457 = sphi 0, %s459
      %s460 = sphi 0, %s457
      %s461 = sphi 0, %s460
      %s477 = sphi 0, %s461
      %s483 = sphi 0, %s485
      %s486 = sphi 0, %s483
      %s487 = sphi 0, %s486
      %s503 = sphi 0, %s487
      %s509 = sphi 0, %s511
      %s512 = sphi 0, %s509
      %s513 = sphi 0, %s512
      %s529 = sphi 0, %s513
    $region4: #{tpu_custom_call.1} parent=1 // loop_header_branch
      %41 = sbr.rel (%p39) target = $region8
    $region5: #{tpu_custom_call.1} parent=1 // loop_body
      %s43 = ssub.s32 %s38, 1
      %s44 = ssub.s32 %s38, 2
      %s54 = sadd.s32 1, %s47
      %p55 = scmp.ge.s32.totalorder %s54, 2
      %s56 = scalar_select %p55, 0, %s54
      %s57 = sadd.s32 1, %s46
      %s58 = scalar_select %p55, %s57, %s46
      %p59 = scmp.ge.s32.totalorder %s58, 2
      %s60 = scalar_select %p59, 0, %s58
      %s61 = sadd.s32 1, %s45
      %s62 = scalar_select %p59, %s61, %s45
      %p63 = scmp.ge.s32.totalorder %s62, 2
      %s64 = scalar_select %p63, 0, %s62
      %s65 = ssub.s32 %s45, %s64
      %p66 = scmp.eq.s32.totalorder %s65, 0
      %s68 = sadd.s32 %s67, 1
      %s69 = scalar_select %p66, %s67, %s68
      %p72 = pneg %p66
      %p73 = scmp.eq.s32.totalorder %s38, 7
      %p74 = por %p72, %p73
      %p75 = scmp.ne.s32.totalorder %s67, %s70
      %p76 = scmp.eq.s32.totalorder %s38, 0
      %p77 = por %p75, %p76
      %p78 = scmp.ne.s32.totalorder %s67, %s70
      %p79 = scmp.eq.s32.totalorder %s43, 7
      %p80 = por %p78, %p79
      %p81 = scmp.ne.s32.totalorder %s70, %s71
      %p82 = scmp.eq.s32.totalorder %s43, 0
      %p83 = por %p81, %p82
      %p84 = scmp.ne.s32.totalorder %s70, %s71
      %p85 = scmp.eq.s32.totalorder %s44, 7
      %p86 = por %p84, %p85
      %p88 = scmp.ne.s32.totalorder %s71, %s87
      %p89 = scmp.eq.s32.totalorder %s44, 0
      %p90 = por %p88, %p89
      %s91 = ssub.s32 %s46, %s60
      %p92 = scmp.eq.s32.totalorder %s91, 0
      %s94 = sadd.s32 %s93, 1
      %s95 = scalar_select %p92, %s93, %s94
      %p98 = pneg %p92
      %p99 = scmp.eq.s32.totalorder %s38, 7
      %p100 = por %p98, %p99
      %p101 = scmp.ne.s32.totalorder %s93, %s96
      %p102 = scmp.eq.s32.totalorder %s38, 0
      %p103 = por %p101, %p102
      %p104 = scmp.ne.s32.totalorder %s93, %s96
      %p105 = scmp.eq.s32.totalorder %s43, 7
      %p106 = por %p104, %p105
      %p107 = scmp.ne.s32.totalorder %s96, %s97
      %p108 = scmp.eq.s32.totalorder %s43, 0
      %p109 = por %p107, %p108
      %p110 = scmp.ne.s32.totalorder %s96, %s97
      %p111 = scmp.eq.s32.totalorder %s44, 7
      %p112 = por %p110, %p111
      %p114 = scmp.ne.s32.totalorder %s97, %s113
      %p115 = scmp.eq.s32.totalorder %s44, 0
      %p116 = por %p114, %p115
      %s117 = ssub.s32 %s46, %s60
      %p118 = scmp.eq.s32.totalorder %s117, 0
      %s120 = sadd.s32 %s119, 1
      %s121 = scalar_select %p118, %s119, %s120
      %p124 = pneg %p118
      %p125 = scmp.eq.s32.totalorder %s38, 7
      %p126 = por %p124, %p125
      %p127 = scmp.ne.s32.totalorder %s119, %s122
      %p128 = scmp.eq.s32.totalorder %s38, 0
      %p129 = por %p127, %p128
      %p130 = scmp.ne.s32.totalorder %s119, %s122
      %p131 = scmp.eq.s32.totalorder %s43, 7
      %p132 = por %p130, %p131
      %p133 = scmp.ne.s32.totalorder %s122, %s123
      %p134 = scmp.eq.s32.totalorder %s43, 0
      %p135 = por %p133, %p134
      %p136 = scmp.ne.s32.totalorder %s122, %s123
      %p137 = scmp.eq.s32.totalorder %s44, 7
      %p138 = por %p136, %p137
      %p140 = scmp.ne.s32.totalorder %s123, %s139
      %p141 = scmp.eq.s32.totalorder %s44, 0
      %p142 = por %p140, %p141
      %s143 = ssub.s32 %s46, %s60
      %p144 = scmp.eq.s32.totalorder %s143, 0
      %s146 = sadd.s32 %s145, 1
      %s147 = scalar_select %p144, %s145, %s146
      %p150 = pneg %p144
      %p151 = scmp.eq.s32.totalorder %s38, 7
      %p152 = por %p150, %p151
      %p153 = scmp.ne.s32.totalorder %s145, %s148
      %p154 = scmp.eq.s32.totalorder %s38, 0
      %p155 = por %p153, %p154
      %p156 = scmp.ne.s32.totalorder %s145, %s148
      %p157 = scmp.eq.s32.totalorder %s43, 7
      %p158 = por %p156, %p157
      %p159 = scmp.ne.s32.totalorder %s148, %s149
      %p160 = scmp.eq.s32.totalorder %s43, 0
      %p161 = por %p159, %p160
      %p162 = scmp.ne.s32.totalorder %s148, %s149
      %p163 = scmp.eq.s32.totalorder %s44, 7
      %p164 = por %p162, %p163
      %p166 = scmp.ne.s32.totalorder %s149, %s165
      %p167 = scmp.eq.s32.totalorder %s44, 0
      %p168 = por %p166, %p167
      %s169 = ssub.s32 %s46, %s60
      %p170 = scmp.eq.s32.totalorder %s169, 0
      %s172 = sadd.s32 %s171, 1
      %s173 = scalar_select %p170, %s171, %s172
      %p176 = pneg %p170
      %p177 = scmp.eq.s32.totalorder %s38, 7
      %p178 = por %p176, %p177
      %p179 = scmp.ne.s32.totalorder %s171, %s174
      %p180 = scmp.eq.s32.totalorder %s38, 0
      %p181 = por %p179, %p180
      %p182 = scmp.ne.s32.totalorder %s171, %s174
      %p183 = scmp.eq.s32.totalorder %s43, 7
      %p184 = por %p182, %p183
      %p185 = scmp.ne.s32.totalorder %s174, %s175
      %p186 = scmp.eq.s32.totalorder %s43, 0
      %p187 = por %p185, %p186
      %p188 = scmp.ne.s32.totalorder %s174, %s175
      %p189 = scmp.eq.s32.totalorder %s44, 7
      %p190 = por %p188, %p189
      %p192 = scmp.ne.s32.totalorder %s175, %s191
      %p193 = scmp.eq.s32.totalorder %s44, 0
      %p194 = por %p192, %p193
      %s195 = ssub.s32 %s46, %s60
      %p196 = scmp.eq.s32.totalorder %s195, 0
      %s198 = sadd.s32 %s197, 1
      %s199 = scalar_select %p196, %s197, %s198
      %p202 = pneg %p196
      %p203 = scmp.eq.s32.totalorder %s38, 7
      %p204 = por %p202, %p203
      %p205 = scmp.ne.s32.totalorder %s197, %s200
      %p206 = scmp.eq.s32.totalorder %s38, 0
      %p207 = por %p205, %p206
      %p208 = scmp.ne.s32.totalorder %s197, %s200
      %p209 = scmp.eq.s32.totalorder %s43, 7
      %p210 = por %p208, %p209
      %p211 = scmp.ne.s32.totalorder %s200, %s201
      %p212 = scmp.eq.s32.totalorder %s43, 0
      %p213 = por %p211, %p212
      %p214 = scmp.ne.s32.totalorder %s200, %s201
      %p215 = scmp.eq.s32.totalorder %s44, 7
      %p216 = por %p214, %p215
      %p218 = scmp.ne.s32.totalorder %s201, %s217
      %p219 = scmp.eq.s32.totalorder %s44, 0
      %p220 = por %p218, %p219
      %s221 = ssub.s32 %s46, %s60
      %p222 = scmp.eq.s32.totalorder %s221, 0
      %s224 = sadd.s32 %s223, 1
      %s225 = scalar_select %p222, %s223, %s224
      %p228 = pneg %p222
      %p229 = scmp.eq.s32.totalorder %s38, 7
      %p230 = por %p228, %p229
      %p231 = scmp.ne.s32.totalorder %s223, %s226
      %p232 = scmp.eq.s32.totalorder %s38, 0
      %p233 = por %p231, %p232
      %p234 = scmp.ne.s32.totalorder %s223, %s226
      %p235 = scmp.eq.s32.totalorder %s43, 7
      %p236 = por %p234, %p235
      %p237 = scmp.ne.s32.totalorder %s226, %s227
      %p238 = scmp.eq.s32.totalorder %s43, 0
      %p239 = por %p237, %p238
      %p240 = scmp.ne.s32.totalorder %s226, %s227
      %p241 = scmp.eq.s32.totalorder %s44, 7
      %p242 = por %p240, %p241
      %p244 = scmp.ne.s32.totalorder %s227, %s243
      %p245 = scmp.eq.s32.totalorder %s44, 0
      %p246 = por %p244, %p245
      %s247 = ssub.s32 %s46, %s60
      %p248 = scmp.eq.s32.totalorder %s247, 0
      %s250 = sadd.s32 %s249, 1
      %s251 = scalar_select %p248, %s249, %s250
      %p254 = pneg %p248
      %p255 = scmp.eq.s32.totalorder %s38, 7
      %p256 = por %p254, %p255
      %p257 = scmp.ne.s32.totalorder %s249, %s252
      %p258 = scmp.eq.s32.totalorder %s38, 0
      %p259 = por %p257, %p258
      %p260 = scmp.ne.s32.totalorder %s249, %s252
      %p261 = scmp.eq.s32.totalorder %s43, 7
      %p262 = por %p260, %p261
      %p263 = scmp.ne.s32.totalorder %s252, %s253
      %p264 = scmp.eq.s32.totalorder %s43, 0
      %p265 = por %p263, %p264
      %p266 = scmp.ne.s32.totalorder %s252, %s253
      %p267 = scmp.eq.s32.totalorder %s44, 7
      %p268 = por %p266, %p267
      %p270 = scmp.ne.s32.totalorder %s253, %s269
      %p271 = scmp.eq.s32.totalorder %s44, 0
      %p272 = por %p270, %p271
      %s273 = ssub.s32 %s46, %s60
      %p274 = scmp.eq.s32.totalorder %s273, 0
      %s276 = sadd.s32 %s275, 1
      %s277 = scalar_select %p274, %s275, %s276
      %p280 = pneg %p274
      %p281 = scmp.eq.s32.totalorder %s38, 7
      %p282 = por %p280, %p281
      %p283 = scmp.ne.s32.totalorder %s275, %s278
      %p284 = scmp.eq.s32.totalorder %s38, 0
      %p285 = por %p283, %p284
      %p286 = scmp.ne.s32.totalorder %s275, %s278
      %p287 = scmp.eq.s32.totalorder %s43, 7
      %p288 = por %p286, %p287
      %p289 = scmp.ne.s32.totalorder %s278, %s279
      %p290 = scmp.eq.s32.totalorder %s43, 0
      %p291 = por %p289, %p290
      %p292 = scmp.ne.s32.totalorder %s278, %s279
      %p293 = scmp.eq.s32.totalorder %s44, 7
      %p294 = por %p292, %p293
      %p296 = scmp.ne.s32.totalorder %s279, %s295
      %p297 = scmp.eq.s32.totalorder %s44, 0
      %p298 = por %p296, %p297
      %s299 = ssub.s32 %s46, %s60
      %p300 = scmp.eq.s32.totalorder %s299, 0
      %s302 = sadd.s32 %s301, 1
      %s303 = scalar_select %p300, %s301, %s302
      %p306 = pneg %p300
      %p307 = scmp.eq.s32.totalorder %s38, 7
      %p308 = por %p306, %p307
      %p309 = scmp.ne.s32.totalorder %s301, %s304
      %p310 = scmp.eq.s32.totalorder %s38, 0
      %p311 = por %p309, %p310
      %p312 = scmp.ne.s32.totalorder %s301, %s304
      %p313 = scmp.eq.s32.totalorder %s43, 7
      %p314 = por %p312, %p313
      %p315 = scmp.ne.s32.totalorder %s304, %s305
      %p316 = scmp.eq.s32.totalorder %s43, 0
      %p317 = por %p315, %p316
      %p318 = scmp.ne.s32.totalorder %s304, %s305
      %p319 = scmp.eq.s32.totalorder %s44, 7
      %p320 = por %p318, %p319
      %p322 = scmp.ne.s32.totalorder %s305, %s321
      %p323 = scmp.eq.s32.totalorder %s44, 0
      %p324 = por %p322, %p323
      %s325 = ssub.s32 %s46, %s60
      %p326 = scmp.eq.s32.totalorder %s325, 0
      %s328 = sadd.s32 %s327, 1
      %s329 = scalar_select %p326, %s327, %s328
      %p332 = pneg %p326
      %p333 = scmp.eq.s32.totalorder %s38, 7
      %p334 = por %p332, %p333
      %p335 = scmp.ne.s32.totalorder %s327, %s330
      %p336 = scmp.eq.s32.totalorder %s38, 0
      %p337 = por %p335, %p336
      %p338 = scmp.ne.s32.totalorder %s327, %s330
      %p339 = scmp.eq.s32.totalorder %s43, 7
      %p340 = por %p338, %p339
      %p341 = scmp.ne.s32.totalorder %s330, %s331
      %p342 = scmp.eq.s32.totalorder %s43, 0
      %p343 = por %p341, %p342
      %p344 = scmp.ne.s32.totalorder %s330, %s331
      %p345 = scmp.eq.s32.totalorder %s44, 7
      %p346 = por %p344, %p345
      %p348 = scmp.ne.s32.totalorder %s331, %s347
      %p349 = scmp.eq.s32.totalorder %s44, 0
      %p350 = por %p348, %p349
      %s351 = ssub.s32 %s46, %s60
      %p352 = scmp.eq.s32.totalorder %s351, 0
      %s354 = sadd.s32 %s353, 1
      %s355 = scalar_select %p352, %s353, %s354
      %p358 = pneg %p352
      %p359 = scmp.eq.s32.totalorder %s38, 7
      %p360 = por %p358, %p359
      %p361 = scmp.ne.s32.totalorder %s353, %s356
      %p362 = scmp.eq.s32.totalorder %s38, 0
      %p363 = por %p361, %p362
      %p364 = scmp.ne.s32.totalorder %s353, %s356
      %p365 = scmp.eq.s32.totalorder %s43, 7
      %p366 = por %p364, %p365
      %p367 = scmp.ne.s32.totalorder %s356, %s357
      %p368 = scmp.eq.s32.totalorder %s43, 0
      %p369 = por %p367, %p368
      %p370 = scmp.ne.s32.totalorder %s356, %s357
      %p371 = scmp.eq.s32.totalorder %s44, 7
      %p372 = por %p370, %p371
      %p374 = scmp.ne.s32.totalorder %s357, %s373
      %p375 = scmp.eq.s32.totalorder %s44, 0
      %p376 = por %p374, %p375
      %s377 = ssub.s32 %s46, %s60
      %p378 = scmp.eq.s32.totalorder %s377, 0
      %s380 = sadd.s32 %s379, 1
      %s381 = scalar_select %p378, %s379, %s380
      %p384 = pneg %p378
      %p385 = scmp.eq.s32.totalorder %s38, 7
      %p386 = por %p384, %p385
      %p387 = scmp.ne.s32.totalorder %s379, %s382
      %p388 = scmp.eq.s32.totalorder %s38, 0
      %p389 = por %p387, %p388
      %p390 = scmp.ne.s32.totalorder %s379, %s382
      %p391 = scmp.eq.s32.totalorder %s43, 7
      %p392 = por %p390, %p391
      %p393 = scmp.ne.s32.totalorder %s382, %s383
      %p394 = scmp.eq.s32.totalorder %s43, 0
      %p395 = por %p393, %p394
      %p396 = scmp.ne.s32.totalorder %s382, %s383
      %p397 = scmp.eq.s32.totalorder %s44, 7
      %p398 = por %p396, %p397
      %p400 = scmp.ne.s32.totalorder %s383, %s399
      %p401 = scmp.eq.s32.totalorder %s44, 0
      %p402 = por %p400, %p401
      %s403 = ssub.s32 %s46, %s60
      %p404 = scmp.eq.s32.totalorder %s403, 0
      %s406 = sadd.s32 %s405, 1
      %s407 = scalar_select %p404, %s405, %s406
      %p410 = pneg %p404
      %p411 = scmp.eq.s32.totalorder %s38, 7
      %p412 = por %p410, %p411
      %p413 = scmp.ne.s32.totalorder %s405, %s408
      %p414 = scmp.eq.s32.totalorder %s38, 0
      %p415 = por %p413, %p414
      %p416 = scmp.ne.s32.totalorder %s405, %s408
      %p417 = scmp.eq.s32.totalorder %s43, 7
      %p418 = por %p416, %p417
      %p419 = scmp.ne.s32.totalorder %s408, %s409
      %p420 = scmp.eq.s32.totalorder %s43, 0
      %p421 = por %p419, %p420
      %p422 = scmp.ne.s32.totalorder %s408, %s409
      %p423 = scmp.eq.s32.totalorder %s44, 7
      %p424 = por %p422, %p423
      %p426 = scmp.ne.s32.totalorder %s409, %s425
      %p427 = scmp.eq.s32.totalorder %s44, 0
      %p428 = por %p426, %p427
      %s429 = ssub.s32 %s46, %s60
      %p430 = scmp.eq.s32.totalorder %s429, 0
      %s432 = sadd.s32 %s431, 1
      %s433 = scalar_select %p430, %s431, %s432
      %p436 = pneg %p430
      %p437 = scmp.eq.s32.totalorder %s38, 7
      %p438 = por %p436, %p437
      %p439 = scmp.ne.s32.totalorder %s431, %s434
      %p440 = scmp.eq.s32.totalorder %s38, 0
      %p441 = por %p439, %p440
      %p442 = scmp.ne.s32.totalorder %s431, %s434
      %p443 = scmp.eq.s32.totalorder %s43, 7
      %p444 = por %p442, %p443
      %p445 = scmp.ne.s32.totalorder %s434, %s435
      %p446 = scmp.eq.s32.totalorder %s43, 0
      %p447 = por %p445, %p446
      %p448 = scmp.ne.s32.totalorder %s434, %s435
      %p449 = scmp.eq.s32.totalorder %s44, 7
      %p450 = por %p448, %p449
      %p452 = scmp.ne.s32.totalorder %s435, %s451
      %p453 = scmp.eq.s32.totalorder %s44, 0
      %p454 = por %p452, %p453
      %s455 = ssub.s32 %s46, %s60
      %p456 = scmp.eq.s32.totalorder %s455, 0
      %s458 = sadd.s32 %s457, 1
      %s459 = scalar_select %p456, %s457, %s458
      %p462 = pneg %p456
      %p463 = scmp.eq.s32.totalorder %s38, 7
      %p464 = por %p462, %p463
      %p465 = scmp.ne.s32.totalorder %s457, %s460
      %p466 = scmp.eq.s32.totalorder %s38, 0
      %p467 = por %p465, %p466
      %p468 = scmp.ne.s32.totalorder %s457, %s460
      %p469 = scmp.eq.s32.totalorder %s43, 7
      %p470 = por %p468, %p469
      %p471 = scmp.ne.s32.totalorder %s460, %s461
      %p472 = scmp.eq.s32.totalorder %s43, 0
      %p473 = por %p471, %p472
      %p474 = scmp.ne.s32.totalorder %s460, %s461
      %p475 = scmp.eq.s32.totalorder %s44, 7
      %p476 = por %p474, %p475
      %p478 = scmp.ne.s32.totalorder %s461, %s477
      %p479 = scmp.eq.s32.totalorder %s44, 0
      %p480 = por %p478, %p479
      %s481 = ssub.s32 %s46, %s60
      %p482 = scmp.eq.s32.totalorder %s481, 0
      %s484 = sadd.s32 %s483, 1
      %s485 = scalar_select %p482, %s483, %s484
      %p488 = pneg %p482
      %p489 = scmp.eq.s32.totalorder %s38, 7
      %p490 = por %p488, %p489
      %p491 = scmp.ne.s32.totalorder %s483, %s486
      %p492 = scmp.eq.s32.totalorder %s38, 0
      %p493 = por %p491, %p492
      %p494 = scmp.ne.s32.totalorder %s483, %s486
      %p495 = scmp.eq.s32.totalorder %s43, 7
      %p496 = por %p494, %p495
      %p497 = scmp.ne.s32.totalorder %s486, %s487
      %p498 = scmp.eq.s32.totalorder %s43, 0
      %p499 = por %p497, %p498
      %p500 = scmp.ne.s32.totalorder %s486, %s487
      %p501 = scmp.eq.s32.totalorder %s44, 7
      %p502 = por %p500, %p501
      %p504 = scmp.ne.s32.totalorder %s487, %s503
      %p505 = scmp.eq.s32.totalorder %s44, 0
      %p506 = por %p504, %p505
      %s507 = ssub.s32 %s45, %s64
      %p508 = scmp.eq.s32.totalorder %s507, 0
      %s510 = sadd.s32 %s509, 1
      %s511 = scalar_select %p508, %s509, %s510
      %p514 = pneg %p508
      %p515 = scmp.eq.s32.totalorder %s38, 7
      %p516 = por %p514, %p515
      %p517 = scmp.ne.s32.totalorder %s509, %s512
      %p518 = scmp.eq.s32.totalorder %s38, 0
      %p519 = por %p517, %p518
      %p520 = scmp.ne.s32.totalorder %s509, %s512
      %p521 = scmp.eq.s32.totalorder %s43, 7
      %p522 = por %p520, %p521
      %p523 = scmp.ne.s32.totalorder %s512, %s513
      %p524 = scmp.eq.s32.totalorder %s43, 0
      %p525 = por %p523, %p524
      %p526 = scmp.ne.s32.totalorder %s512, %s513
      %p527 = scmp.eq.s32.totalorder %s44, 7
      %p528 = por %p526, %p527
      %p530 = scmp.ne.s32.totalorder %s513, %s529
      %p531 = scmp.eq.s32.totalorder %s44, 0
      %p532 = por %p530, %p531
      %p533 = scmp.le.s32.totalorder 1, %s38
      %p534 = scmp.lt.s32.totalorder %s38, 9
      %p535 = pnand %p533, %p534
      %p536 = pneg %p535
      // Predicated region
      $region9: #{tpu_custom_call.1} parent=5 // pred_check
        _
      $region10: #{tpu_custom_call.1} parent=5 // pred_check_branch
        %538 = sbr.rel (%p535) target = $region12
      $region11: #{tpu_custom_call.1} parent=5 // pred_region
        %s539 = ssub.s32 %s38, 1
      $region12: #{tpu_custom_call.1} parent=5 // pred_fallthru
        _
      %p540 = scmp.lt.s32.totalorder %s38, 8
      // Predicated region
      $region13: #{tpu_custom_call.1} parent=5 // pred_check
        %p541 = pneg %p540
      $region14: #{tpu_custom_call.1} parent=5 // pred_check_branch
        %543 = sbr.rel (%p541) target = $region16
      $region15: #{tpu_custom_call.1} parent=5 // pred_region
        // Predicated region
        $region17: #{tpu_custom_call.1} parent=15 // pred_check
          %p544 = pneg %p77
        $region18: #{tpu_custom_call.1} parent=15 // pred_check_branch
          %546 = sbr.rel (%p544) target = $region20
        $region19: #{tpu_custom_call.1} parent=15 // pred_region
          %s547 = sand.u32 %s67, 1
          %s548 = scalar_lea.sflag [#allocation6], %s547
          %s549 = sand.u32 %s67, 1
          %s550 = smul.addr %s549, 8
          %s551 = scalar_lea.vmem [#allocation5], %s550
          %553 = vsyncadd %s548, 0
          %s554 = smul.addr %s45, 2
          %s555 = smul.addr %s554, 4
          %s556 = scalar_lea.hbm %s0, %s555
          %s557 = sshll.u32 %s556, 4
          %s558 = int_to_ptr.hbm [resolvable:$true] %s557
          %s559 = sshll.u32 %s551, 4
          %s560 = int_to_ptr.vmem [resolvable:$true] %s559
          %565 = dma.hbm_to_vmem [thread:$0]  %s558, 128, %s560, %s548, 64, 64, 4
        $region20: #{tpu_custom_call.1} parent=15 // pred_fallthru
          _
        // Predicated region
        $region21: #{tpu_custom_call.1} parent=15 // pred_check
          %p566 = pneg %p103
        $region22: #{tpu_custom_call.1} parent=15 // pred_check_branch
          %568 = sbr.rel (%p566) target = $region24
        $region23: #{tpu_custom_call.1} parent=15 // pred_region
          %p569 = scmp.lt.s32.totalorder %s46, 1
          %s570 = scalar_select %p569, %s46, 1
          %s571 = smul.addr %s570, 4
          %s572 = smul.addr %s571, 4
          %s573 = scalar_lea.vmem %s1, %s572
        $region24: #{tpu_custom_call.1} parent=15 // pred_fallthru
          _
        // Predicated region
        $region25: #{tpu_custom_call.1} parent=15 // pred_check
          %p574 = pneg %p129
        $region26: #{tpu_custom_call.1} parent=15 // pred_check_branch
          %576 = sbr.rel (%p574) target = $region28
        $region27: #{tpu_custom_call.1} parent=15 // pred_region
          %p577 = scmp.lt.s32.totalorder %s46, 1
          %s578 = scalar_select %p577, %s46, 1
          %s579 = smul.addr %s578, 4
          %s580 = smul.addr %s579, 4
          %s581 = scalar_lea.vmem %s2, %s580
        $region28: #{tpu_custom_call.1} parent=15 // pred_fallthru
          _
        // Predicated region
        $region29: #{tpu_custom_call.1} parent=15 // pred_check
          %p582 = pneg %p155
        $region30: #{tpu_custom_call.1} parent=15 // pred_check_branch
          %584 = sbr.rel (%p582) target = $region32
        $region31: #{tpu_custom_call.1} parent=15 // pred_region
          %p585 = scmp.lt.s32.totalorder %s46, 1
          %s586 = scalar_select %p585, %s46, 1
          %s587 = smul.addr %s586, 4
          %s588 = smul.addr %s587, 4
          %s589 = scalar_lea.vmem %s3, %s588
        $region32: #{tpu_custom_call.1} parent=15 // pred_fallthru
          _
        // Predicated region
        $region33: #{tpu_custom_call.1} parent=15 // pred_check
          %p590 = pneg %p181
        $region34: #{tpu_custom_call.1} parent=15 // pred_check_branch
          %592 = sbr.rel (%p590) target = $region36
        $region35: #{tpu_custom_call.1} parent=15 // pred_region
          %p593 = scmp.lt.s32.totalorder %s46, 1
          %s594 = scalar_select %p593, %s46, 1
          %s595 = scalar_lea.vmem %s4, %s594
        $region36: #{tpu_custom_call.1} parent=15 // pred_fallthru
          _
        // Predicated region
        $region37: #{tpu_custom_call.1} parent=15 // pred_check
          %p596 = pneg %p207
        $region38: #{tpu_custom_call.1} parent=15 // pred_check_branch
          %598 = sbr.rel (%p596) target = $region40
        $region39: #{tpu_custom_call.1} parent=15 // pred_region
          %s599 = sand.u32 %s38, 1
          %s600 = scalar_lea.sflag [#allocation9], %s599
          %s601 = sand.u32 %s197, 1
          %s602 = scalar_lea.vmem [#allocation8], %s601
          %604 = vsyncadd %s600, 0
          %s605 = scalar_lea.hbm %s5, %s46
          %s607 = sshll.u32 %s605, 4
          %s608 = int_to_ptr.hbm [resolvable:$true] %s607
          %s609 = sshll.u32 %s602, 4
          %s610 = int_to_ptr.vmem [resolvable:$true] %s609
          %612 = dma.hbm_to_vmem [thread:$0]  %s608, 16, %s610, %s600
        $region40: #{tpu_custom_call.1} parent=15 // pred_fallthru
          _
        // Predicated region
        $region41: #{tpu_custom_call.1} parent=15 // pred_check
          %p613 = pneg %p233
        $region42: #{tpu_custom_call.1} parent=15 // pred_check_branch
          %615 = sbr.rel (%p613) target = $region44
        $region43: #{tpu_custom_call.1} parent=15 // pred_region
          %p616 = scmp.lt.s32.totalorder %s46, 1
          %s617 = scalar_select %p616, %s46, 1
          %s618 = scalar_lea.vmem %s6, %s617
        $region44: #{tpu_custom_call.1} parent=15 // pred_fallthru
          _
        // Predicated region
        $region45: #{tpu_custom_call.1} parent=15 // pred_check
          %p619 = pneg %p259
        $region46: #{tpu_custom_call.1} parent=15 // pred_check_branch
          %621 = sbr.rel (%p619) target = $region48
        $region47: #{tpu_custom_call.1} parent=15 // pred_region
          %s622 = sand.u32 %s38, 1
          %s623 = scalar_lea.sflag [#allocation9], %s622
          %s624 = sand.u32 %s249, 1
          %s625 = smul.addr %s624, 16
          %s626 = scalar_lea.vmem [#allocation10], %s625
          %628 = vsyncadd %s623, 0
          %s629 = smul.addr %s46, 4
          %s630 = smul.addr %s629, 4
          %s631 = scalar_lea.hbm %s7, %s630
          %s632 = sshll.u32 %s631, 4
          %s633 = int_to_ptr.hbm [resolvable:$true] %s632
          %s634 = sshll.u32 %s626, 4
          %s635 = int_to_ptr.vmem [resolvable:$true] %s634
          %640 = dma.hbm_to_vmem [thread:$0]  %s633, 256, %s635, %s623, 64, 64, 4
        $region48: #{tpu_custom_call.1} parent=15 // pred_fallthru
          _
        // Predicated region
        $region49: #{tpu_custom_call.1} parent=15 // pred_check
          %p641 = pneg %p285
        $region50: #{tpu_custom_call.1} parent=15 // pred_check_branch
          %643 = sbr.rel (%p641) target = $region52
        $region51: #{tpu_custom_call.1} parent=15 // pred_region
          %p644 = scmp.lt.s32.totalorder %s46, 1
          %s645 = scalar_select %p644, %s46, 1
          %s646 = scalar_lea.vmem %s8, %s645
        $region52: #{tpu_custom_call.1} parent=15 // pred_fallthru
          _
        // Predicated region
        $region53: #{tpu_custom_call.1} parent=15 // pred_check
          %p647 = pneg %p311
        $region54: #{tpu_custom_call.1} parent=15 // pred_check_branch
          %649 = sbr.rel (%p647) target = $region56
        $region55: #{tpu_custom_call.1} parent=15 // pred_region
          %s650 = sand.u32 %s38, 1
          %s651 = scalar_lea.sflag [#allocation12], %s650
          %s652 = sand.u32 %s301, 1
          %s653 = scalar_lea.vmem [#allocation11], %s652
          %655 = vsyncadd %s651, 0
          %s656 = scalar_lea.hbm %s9, %s46
          %s658 = sshll.u32 %s656, 4
          %s659 = int_to_ptr.hbm [resolvable:$true] %s658
          %s660 = sshll.u32 %s653, 4
          %s661 = int_to_ptr.vmem [resolvable:$true] %s660
          %663 = dma.hbm_to_vmem [thread:$0]  %s659, 16, %s661, %s651
        $region56: #{tpu_custom_call.1} parent=15 // pred_fallthru
          _
        // Predicated region
        $region57: #{tpu_custom_call.1} parent=15 // pred_check
          %p664 = pneg %p337
        $region58: #{tpu_custom_call.1} parent=15 // pred_check_branch
          %666 = sbr.rel (%p664) target = $region60
        $region59: #{tpu_custom_call.1} parent=15 // pred_region
          %p667 = scmp.lt.s32.totalorder %s46, 1
          %s668 = scalar_select %p667, %s46, 1
          %s669 = scalar_lea.vmem %s10, %s668
        $region60: #{tpu_custom_call.1} parent=15 // pred_fallthru
          _
        // Predicated region
        $region61: #{tpu_custom_call.1} parent=15 // pred_check
          %p670 = pneg %p363
        $region62: #{tpu_custom_call.1} parent=15 // pred_check_branch
          %672 = sbr.rel (%p670) target = $region64
        $region63: #{tpu_custom_call.1} parent=15 // pred_region
          %s673 = sand.u32 %s38, 1
          %s674 = scalar_lea.sflag [#allocation12], %s673
          %s675 = sand.u32 %s353, 1
          %s676 = smul.addr %s675, 16
          %s677 = scalar_lea.vmem [#allocation13], %s676
          %679 = vsyncadd %s674, 0
          %s680 = smul.addr %s46, 4
          %s681 = smul.addr %s680, 4
          %s682 = scalar_lea.hbm %s11, %s681
          %s683 = sshll.u32 %s682, 4
          %s684 = int_to_ptr.hbm [resolvable:$true] %s683
          %s685 = sshll.u32 %s677, 4
          %s686 = int_to_ptr.vmem [resolvable:$true] %s685
          %691 = dma.hbm_to_vmem [thread:$0]  %s684, 256, %s686, %s674, 64, 64, 4
        $region64: #{tpu_custom_call.1} parent=15 // pred_fallthru
          _
        // Predicated region
        $region65: #{tpu_custom_call.1} parent=15 // pred_check
          %p692 = pneg %p389
        $region66: #{tpu_custom_call.1} parent=15 // pred_check_branch
          %694 = sbr.rel (%p692) target = $region68
        $region67: #{tpu_custom_call.1} parent=15 // pred_region
          %p695 = scmp.lt.s32.totalorder %s46, 1
          %s696 = scalar_select %p695, %s46, 1
          %s697 = scalar_lea.vmem %s12, %s696
        $region68: #{tpu_custom_call.1} parent=15 // pred_fallthru
          _
        // Predicated region
        $region69: #{tpu_custom_call.1} parent=15 // pred_check
          %p698 = pneg %p415
        $region70: #{tpu_custom_call.1} parent=15 // pred_check_branch
          %700 = sbr.rel (%p698) target = $region72
        $region71: #{tpu_custom_call.1} parent=15 // pred_region
          %p701 = scmp.lt.s32.totalorder %s46, 1
          %s702 = scalar_select %p701, %s46, 1
          %s703 = smul.addr %s702, 8
          %s704 = smul.addr %s703, 4
          %s705 = scalar_lea.vmem %s13, %s704
        $region72: #{tpu_custom_call.1} parent=15 // pred_fallthru
          _
        // Predicated region
        $region73: #{tpu_custom_call.1} parent=15 // pred_check
          %p706 = pneg %p441
        $region74: #{tpu_custom_call.1} parent=15 // pred_check_branch
          %708 = sbr.rel (%p706) target = $region76
        $region75: #{tpu_custom_call.1} parent=15 // pred_region
          %p709 = scmp.lt.s32.totalorder %s46, 1
          %s710 = scalar_select %p709, %s46, 1
          %s711 = scalar_lea.vmem %s14, %s710
        $region76: #{tpu_custom_call.1} parent=15 // pred_fallthru
          _
        // Predicated region
        $region77: #{tpu_custom_call.1} parent=15 // pred_check
          %p712 = pneg %p467
        $region78: #{tpu_custom_call.1} parent=15 // pred_check_branch
          %714 = sbr.rel (%p712) target = $region80
        $region79: #{tpu_custom_call.1} parent=15 // pred_region
          %s715 = sand.u32 %s457, 1
          %s716 = scalar_lea.sflag [#allocation15], %s715
          %s717 = sand.u32 %s457, 1
          %s718 = scalar_lea.vmem [#allocation14], %s717
          %720 = vsyncadd %s716, 0
          %s721 = scalar_lea.hbm %s15, %s46
          %s723 = sshll.u32 %s721, 4
          %s724 = int_to_ptr.hbm [resolvable:$true] %s723
          %s725 = sshll.u32 %s718, 4
          %s726 = int_to_ptr.vmem [resolvable:$true] %s725
          %728 = dma.hbm_to_vmem [thread:$0]  %s724, 16, %s726, %s716
        $region80: #{tpu_custom_call.1} parent=15 // pred_fallthru
          _
        // Predicated region
        $region81: #{tpu_custom_call.1} parent=15 // pred_check
          %p729 = pneg %p493
        $region82: #{tpu_custom_call.1} parent=15 // pred_check_branch
          %731 = sbr.rel (%p729) target = $region84
        $region83: #{tpu_custom_call.1} parent=15 // pred_region
          %p732 = scmp.lt.s32.totalorder %s46, 1
          %s733 = scalar_select %p732, %s46, 1
          %s734 = scalar_lea.vmem %s16, %s733
        $region84: #{tpu_custom_call.1} parent=15 // pred_fallthru
          _
      $region16: #{tpu_custom_call.1} parent=5 // pred_fallthru
        _
      %p735 = scmp.le.s32.totalorder 1, %s38
      %p736 = scmp.lt.s32.totalorder %s38, 9
      %p737 = pnand %p735, %p736
      %p738 = pneg %p737
      // Predicated region
      $region85: #{tpu_custom_call.1} parent=5 // pred_check
        _
      $region86: #{tpu_custom_call.1} parent=5 // pred_check_branch
        %740 = sbr.rel (%p737) target = $region88
      $region87: #{tpu_custom_call.1} parent=5 // pred_region
        %s741 = ssub.s32 %s38, 1
        %s742 = sand.u32 %s70, 1
        %s743 = scalar_lea.sflag [#allocation6], %s742
        %s744 = sand.u32 %s70, 1
        %s745 = smul.addr %s744, 8
        %s746 = scalar_lea.vmem [#allocation5], %s745
        // Predicated region
        $region89: #{tpu_custom_call.1} parent=87 // pred_check
          %p747 = pneg %p83
        $region90: #{tpu_custom_call.1} parent=87 // pred_check_branch
          %749 = sbr.rel (%p747) target = $region92
        $region91: #{tpu_custom_call.1} parent=87 // pred_region
          %751 = dma.done %s743, 128
        $region92: #{tpu_custom_call.1} parent=87 // pred_fallthru
          _
        %s752 = sand.u32 %s43, 1
        %s753 = scalar_lea.sflag [#allocation9], %s752
        %s754 = sand.u32 %s200, 1
        %s755 = scalar_lea.vmem [#allocation8], %s754
        // Predicated region
        $region93: #{tpu_custom_call.1} parent=87 // pred_check
          %p756 = pneg %p213
        $region94: #{tpu_custom_call.1} parent=87 // pred_check_branch
          %758 = sbr.rel (%p756) target = $region96
        $region95: #{tpu_custom_call.1} parent=87 // pred_region
          %760 = dma.done %s753, 16
        $region96: #{tpu_custom_call.1} parent=87 // pred_fallthru
          _
        %s761 = sand.u32 %s43, 1
        %s762 = scalar_lea.sflag [#allocation9], %s761
        %s763 = sand.u32 %s252, 1
        %s764 = smul.addr %s763, 16
        %s765 = scalar_lea.vmem [#allocation10], %s764
        // Predicated region
        $region97: #{tpu_custom_call.1} parent=87 // pred_check
          %p766 = pneg %p265
        $region98: #{tpu_custom_call.1} parent=87 // pred_check_branch
          %768 = sbr.rel (%p766) target = $region100
        $region99: #{tpu_custom_call.1} parent=87 // pred_region
          %770 = dma.done %s762, 256
        $region100: #{tpu_custom_call.1} parent=87 // pred_fallthru
          _
        %s771 = sand.u32 %s43, 1
        %s772 = scalar_lea.sflag [#allocation12], %s771
        %s773 = sand.u32 %s304, 1
        %s774 = scalar_lea.vmem [#allocation11], %s773
        // Predicated region
        $region101: #{tpu_custom_call.1} parent=87 // pred_check
          %p775 = pneg %p317
        $region102: #{tpu_custom_call.1} parent=87 // pred_check_branch
          %777 = sbr.rel (%p775) target = $region104
        $region103: #{tpu_custom_call.1} parent=87 // pred_region
          %779 = dma.done %s772, 16
        $region104: #{tpu_custom_call.1} parent=87 // pred_fallthru
          _
        %s780 = sand.u32 %s43, 1
        %s781 = scalar_lea.sflag [#allocation12], %s780
        %s782 = sand.u32 %s356, 1
        %s783 = smul.addr %s782, 16
        %s784 = scalar_lea.vmem [#allocation13], %s783
        // Predicated region
        $region105: #{tpu_custom_call.1} parent=87 // pred_check
          %p785 = pneg %p369
        $region106: #{tpu_custom_call.1} parent=87 // pred_check_branch
          %787 = sbr.rel (%p785) target = $region108
        $region107: #{tpu_custom_call.1} parent=87 // pred_region
          %789 = dma.done %s781, 256
        $region108: #{tpu_custom_call.1} parent=87 // pred_fallthru
          _
        %s790 = sand.u32 %s460, 1
        %s791 = scalar_lea.sflag [#allocation15], %s790
        %s792 = sand.u32 %s460, 1
        %s793 = scalar_lea.vmem [#allocation14], %s792
        // Predicated region
        $region109: #{tpu_custom_call.1} parent=87 // pred_check
          %p794 = pneg %p473
        $region110: #{tpu_custom_call.1} parent=87 // pred_check_branch
          %796 = sbr.rel (%p794) target = $region112
        $region111: #{tpu_custom_call.1} parent=87 // pred_region
          %798 = dma.done %s791, 16
        $region112: #{tpu_custom_call.1} parent=87 // pred_fallthru
          _
        %s799 = sand.u32 %s70, 1
        %s800 = scalar_lea.sflag [#allocation6], %s799
        %s801 = sand.u32 %s70, 1
        %s802 = smul.addr %s801, 8
        %s803 = scalar_lea.vmem [#allocation5], %s802
        %p804 = pneg %p83
        %p805 = pneg %p80
        %p806 = scmp.lt.s32.totalorder %s49, 1
        %s807 = scalar_select %p806, %s49, 1
        %s808 = smul.addr %s807, 4
        %s809 = smul.addr %s808, 4
        %s810 = scalar_lea.vmem %s1, %s809
        %p811 = pneg %p109
        %p812 = pneg %p106
        %p813 = scmp.lt.s32.totalorder %s49, 1
        %s814 = scalar_select %p813, %s49, 1
        %s815 = smul.addr %s814, 4
        %s816 = smul.addr %s815, 4
        %s817 = scalar_lea.vmem %s2, %s816
        %p818 = pneg %p135
        %p819 = pneg %p132
        %p820 = scmp.lt.s32.totalorder %s49, 1
        %s821 = scalar_select %p820, %s49, 1
        %s822 = smul.addr %s821, 4
        %s823 = smul.addr %s822, 4
        %s824 = scalar_lea.vmem %s3, %s823
        %p825 = pneg %p161
        %p826 = pneg %p158
        %p827 = scmp.lt.s32.totalorder %s49, 1
        %s828 = scalar_select %p827, %s49, 1
        %s829 = scalar_lea.vmem %s4, %s828
        %p830 = pneg %p187
        %p831 = pneg %p184
        %s832 = sand.u32 %s43, 1
        %s833 = scalar_lea.sflag [#allocation9], %s832
        %s834 = sand.u32 %s200, 1
        %s835 = scalar_lea.vmem [#allocation8], %s834
        %p836 = pneg %p213
        %p837 = pneg %p210
        %p838 = scmp.lt.s32.totalorder %s49, 1
        %s839 = scalar_select %p838, %s49, 1
        %s840 = scalar_lea.vmem %s6, %s839
        %p841 = pneg %p239
        %p842 = pneg %p236
        %s843 = sand.u32 %s43, 1
        %s844 = scalar_lea.sflag [#allocation9], %s843
        %s845 = sand.u32 %s252, 1
        %s846 = smul.addr %s845, 16
        %s847 = scalar_lea.vmem [#allocation10], %s846
        %p848 = pneg %p265
        %p849 = pneg %p262
        %p850 = scmp.lt.s32.totalorder %s49, 1
        %s851 = scalar_select %p850, %s49, 1
        %s852 = scalar_lea.vmem %s8, %s851
        %p853 = pneg %p291
        %p854 = pneg %p288
        %s855 = sand.u32 %s43, 1
        %s856 = scalar_lea.sflag [#allocation12], %s855
        %s857 = sand.u32 %s304, 1
        %s858 = scalar_lea.vmem [#allocation11], %s857
        %p859 = pneg %p317
        %p860 = pneg %p314
        %p861 = scmp.lt.s32.totalorder %s49, 1
        %s862 = scalar_select %p861, %s49, 1
        %s863 = scalar_lea.vmem %s10, %s862
        %p864 = pneg %p343
        %p865 = pneg %p340
        %s866 = sand.u32 %s43, 1
        %s867 = scalar_lea.sflag [#allocation12], %s866
        %s868 = sand.u32 %s356, 1
        %s869 = smul.addr %s868, 16
        %s870 = scalar_lea.vmem [#allocation13], %s869
        %p871 = pneg %p369
        %p872 = pneg %p366
        %p873 = scmp.lt.s32.totalorder %s49, 1
        %s874 = scalar_select %p873, %s49, 1
        %s875 = scalar_lea.vmem %s12, %s874
        %p876 = pneg %p395
        %p877 = pneg %p392
        %p878 = scmp.lt.s32.totalorder %s49, 1
        %s879 = scalar_select %p878, %s49, 1
        %s880 = smul.addr %s879, 8
        %s881 = smul.addr %s880, 4
        %s882 = scalar_lea.vmem %s13, %s881
        %p883 = pneg %p421
        %p884 = pneg %p418
        %p885 = scmp.lt.s32.totalorder %s49, 1
        %s886 = scalar_select %p885, %s49, 1
        %s887 = scalar_lea.vmem %s14, %s886
        %p888 = pneg %p447
        %p889 = pneg %p444
        %s890 = sand.u32 %s460, 1
        %s891 = scalar_lea.sflag [#allocation15], %s890
        %s892 = sand.u32 %s460, 1
        %s893 = scalar_lea.vmem [#allocation14], %s892
        %p894 = pneg %p473
        %p895 = pneg %p470
        %p896 = scmp.lt.s32.totalorder %s49, 1
        %s897 = scalar_select %p896, %s49, 1
        %s898 = scalar_lea.vmem %s16, %s897
        %p899 = pneg %p499
        %p900 = pneg %p496
        %p901 = pneg %p525
        %p902 = pneg %p522
        %s903 = sand.u32 %s512, 1
        %s904 = scalar_lea.sflag [#allocation7], %s903
        %s905 = sand.u32 %s512, 1
        %s906 = smul.addr %s905, 16
        %s907 = scalar_lea.vmem [#allocation16], %s906
        %p908 = scmp.lt.s32.totalorder %s49, 1
        %s909 = scalar_select %p908, %s49, 1
        %s910 = smul.addr %s909, 4
        %s911 = smul.addr %s910, 4
        %s912 = scalar_lea.vmem %s1, %s911
        %p913 = scmp.lt.s32.totalorder %s49, 1
        %s914 = scalar_select %p913, %s49, 1
        %s915 = smul.addr %s914, 4
        %s916 = smul.addr %s915, 4
        %s917 = scalar_lea.vmem %s2, %s916
        %p918 = scmp.lt.s32.totalorder %s49, 1
        %s919 = scalar_select %p918, %s49, 1
        %s920 = smul.addr %s919, 4
        %s921 = smul.addr %s920, 4
        %s922 = scalar_lea.vmem %s3, %s921
        %p923 = scmp.lt.s32.totalorder %s49, 1
        %s924 = scalar_select %p923, %s49, 1
        %s925 = scalar_lea.vmem %s4, %s924
        %p926 = scmp.lt.s32.totalorder %s49, 1
        %s927 = scalar_select %p926, %s49, 1
        %s928 = scalar_lea.vmem %s6, %s927
        %p929 = scmp.lt.s32.totalorder %s49, 1
        %s930 = scalar_select %p929, %s49, 1
        %s931 = scalar_lea.vmem %s8, %s930
        %p932 = scmp.lt.s32.totalorder %s49, 1
        %s933 = scalar_select %p932, %s49, 1
        %s934 = scalar_lea.vmem %s10, %s933
        %p935 = scmp.lt.s32.totalorder %s49, 1
        %s936 = scalar_select %p935, %s49, 1
        %s937 = scalar_lea.vmem %s12, %s936
        %p938 = scmp.lt.s32.totalorder %s49, 1
        %s939 = scalar_select %p938, %s49, 1
        %s940 = smul.addr %s939, 8
        %s941 = smul.addr %s940, 4
        %s942 = scalar_lea.vmem %s13, %s941
        %p943 = scmp.lt.s32.totalorder %s49, 1
        %s944 = scalar_select %p943, %s49, 1
        %s945 = scalar_lea.vmem %s14, %s944
        %p946 = scmp.lt.s32.totalorder %s49, 1
        %s947 = scalar_select %p946, %s49, 1
        %s948 = scalar_lea.vmem %s16, %s947
        %p950 = scmp.eq.s32.totalorder %s49, 0
        %p951 = scmp.eq.s32.totalorder %s50, 0
        %p952 = pnand %p950, %p951
        %p953 = pneg %p952
        // Predicated region
        $region113: #{tpu_custom_call.1} parent=87 // pred_check
          _
        $region114: #{tpu_custom_call.1} parent=87 // pred_check_branch
          %955 = sbr.rel (%p952) target = $region116
        $region115: #{tpu_custom_call.1} parent=87 // pred_region
          %v956 = vld [vmem:[%s746] sm:$0xf]
          %v957 = vld [vmem:[%s746 + $0x4] sm:$0xf]
          %vm958 = vcmask 257024
          %959 = vst.msk [vmem:[#allocation2] sm:$0xf] %vm958, %v956
          %960 = vst.msk [vmem:[#allocation2 + $0x4] sm:$0xf] %vm958, %v957
        $region116: #{tpu_custom_call.1} parent=87 // pred_fallthru
          _
        // Predicated region
        $region117: #{tpu_custom_call.1} parent=87 // pred_check
          %p961 = pneg %p951
        $region118: #{tpu_custom_call.1} parent=87 // pred_check_branch
          %963 = sbr.rel (%p961) target = $region120
        $region119: #{tpu_custom_call.1} parent=87 // pred_region
          %v964 = vld [vmem:[#allocation2] sm:$0xf]
          %v965 = vld [vmem:[#allocation2 + $0x4] sm:$0xf]
          %v966 = vld [vmem:[%s917] sm:$0xf]
          %v967 = vld [vmem:[%s917 + $0x4] sm:$0xf]
          %v968 = vld [vmem:[%s917 + $0x8] sm:$0xf]
          %v969 = vld [vmem:[%s917 + $0xc] sm:$0xf]
          %v970 = vld [vmem:[%s755] sm:$0x1]
          %v972 = vperm.slane %v970, 0
          %v976 = vunpack.c.l.b16 %v964
          %v977 = vunpack.c.l.b16 %v965
          %v978 = vpack.c.b16 %v977, %v976
          %v983 = vunpack.c.l.b16 %v966
          %v984 = vunpack.c.l.b16 %v967
          %v985 = vunpack.c.l.b16 %v968
          %v986 = vunpack.c.l.b16 %v969
          %v987 = vpack.c.b16 %v984, %v983
          %v988 = vpack.c.b16 %v986, %v985
          %vm991 = vcmask 261120
          %v993 = vsel %vm991, %v978, 0
          %995 = vmatpush.bf16.msra.mxu0 0
          %996 = vmatpush.bf16.msra.mxu0 0
          %997 = vmatpush.bf16.msra.mxu0 0
          %998 = vmatpush.bf16.msra.mxu0 0
          %999 = vmatpush.bf16.msra.mxu0 0
          %1000 = vmatpush.bf16.msra.mxu0 0
          %1001 = vmatpush.bf16.msra.mxu0 %v988
          %1002 = vmatpush.bf16.msra.mxu0 %v987
          %1003 = vmatmul.bf16.gmra.mxu0 %v993
          %v1004 = vpop.f32.mrf.mxu0
          %v1005 = vadd.f32 %v972, %v1004
          %v1006 = vpop.f32.mrf.mxu0
          %v1007 = vadd.f32 %v972, %v1006
          %1008 = vdwg.mxu0
          %v1009 = vpack.c.bf16 %v1005, %v1005
          %v1010 = vpack.c.bf16 %v1007, %v1007
          %vm1011 = vcmask 257024
          %1012 = vst.msk [vmem:[#allocation3] sm:$0xf] %vm1011, %v1009
          %1013 = vst.msk [vmem:[#allocation3 + $0x4] sm:$0xf] %vm1011, %v1010
          %v1014 = vld [vmem:[%s922] sm:$0xf]
          %v1015 = vld [vmem:[%s922 + $0x4] sm:$0xf]
          %v1016 = vld [vmem:[%s922 + $0x8] sm:$0xf]
          %v1017 = vld [vmem:[%s922 + $0xc] sm:$0xf]
          %v1018 = vld [vmem:[%s928] sm:$0x1]
          %v1020 = vperm.slane %v1018, 0
          %v1026 = vunpack.c.l.b16 %v1014
          %v1027 = vunpack.c.l.b16 %v1015
          %v1028 = vunpack.c.l.b16 %v1016
          %v1029 = vunpack.c.l.b16 %v1017
          %v1030 = vpack.c.b16 %v1027, %v1026
          %v1031 = vpack.c.b16 %v1029, %v1028
          %1034 = vmatpush.bf16.msra.mxu0 0
          %1035 = vmatpush.bf16.msra.mxu0 0
          %1036 = vmatpush.bf16.msra.mxu0 0
          %1037 = vmatpush.bf16.msra.mxu0 0
          %1038 = vmatpush.bf16.msra.mxu0 0
          %1039 = vmatpush.bf16.msra.mxu0 0
          %1040 = vmatpush.bf16.msra.mxu0 %v1031
          %1041 = vmatpush.bf16.msra.mxu0 %v1030
          %1042 = vmatmul.bf16.gmra.mxu0 %v993
          %v1043 = vpop.f32.mrf.mxu0
          %v1044 = vadd.f32 %v1020, %v1043
          %v1045 = vpop.f32.mrf.mxu0
          %v1046 = vadd.f32 %v1020, %v1045
          %1047 = vdwg.mxu0
          %v1048 = vpack.c.bf16 %v1044, %v1044
          %v1049 = vpack.c.bf16 %v1046, %v1046
          %1050 = vst.msk [vmem:[#allocation4] sm:$0xf] %vm1011, %v1048
          %1051 = vst.msk [vmem:[#allocation4 + $0x4] sm:$0xf] %vm1011, %v1049
        $region120: #{tpu_custom_call.1} parent=87 // pred_fallthru
          _
        %s1052 = smul.u32 %s50, 8
        %s1053 = sshra.s32 %s1052, 3
        %s1054 = sand.u32 %s1052, 7
        %s1055 = smul.addr %s1053, 4
        %s1056 = scalar_lea.vmem [#allocation2], %s1055
        %v1057 = vld [vmem:[%s1056] sm:$0xf]
        %v1058 = vld [vmem:[%s912] sm:$0xf]
        %v1059 = vld [vmem:[%s912 + $0x4] sm:$0xf]
        %v1060 = vld [vmem:[%s912 + $0x8] sm:$0xf]
        %v1061 = vld [vmem:[%s912 + $0xc] sm:$0xf]
        %v1062 = vld [vmem:[%s925] sm:$0x1]
        %v1064 = vperm.slane %v1062, 0
        %v1070 = vunpack.c.l.b16 %v1058
        %v1071 = vunpack.c.l.b16 %v1059
        %v1072 = vunpack.c.l.b16 %v1060
        %v1073 = vunpack.c.l.b16 %v1061
        %v1074 = vpack.c.b16 %v1071, %v1070
        %v1075 = vpack.c.b16 %v1073, %v1072
        %vm1078 = vcmask 261120
        %v1080 = vsel %vm1078, %v1057, 0
        %1082 = vmatpush.bf16.msra.mxu0 0
        %1083 = vmatpush.bf16.msra.mxu0 0
        %1084 = vmatpush.bf16.msra.mxu0 0
        %1085 = vmatpush.bf16.msra.mxu0 0
        %1086 = vmatpush.bf16.msra.mxu0 0
        %1087 = vmatpush.bf16.msra.mxu0 0
        %1088 = vmatpush.bf16.msra.mxu0 %v1075
        %1089 = vmatpush.bf16.msra.mxu0 %v1074
        %1090 = vmatmul.bf16.gmra.mxu0 %v1080
        %v1091 = vpop.f32.mrf.mxu0
        %v1092 = vadd.f32 %v1064, %v1091
        %v1093 = vpop.f32.mrf.mxu0
        %1094 = vdwg.mxu0
        %v1095 = vpack.c.bf16 %v1092, %v1092
        %1097 = vrot.lane.b32.xlu0 %v1095, 120
        %v1098 = vpop.permute.xlu0 %1097
        %1099 = vrot.lane.b32.xlu0 %v1095, 112
        %v1100 = vpop.permute.xlu0 %1099
        %1101 = vrot.lane.b32.xlu0 %v1095, 104
        %v1102 = vpop.permute.xlu0 %1101
        %v1103 = vld [vmem:[#allocation3] sm:$0xf]
        %v1104 = vld [vmem:[#allocation3 + $0x4] sm:$0xf]
        %1107 = vrot.lane.b32.xlu0 %v1103, 120
        %v1108 = vpop.permute.xlu0 %1107
        %1109 = vrot.lane.b32.xlu0 %v1104, 120
        %v1110 = vpop.permute.xlu0 %1109
        %1111 = vrot.lane.b32.xlu0 %v1103, 112
        %v1112 = vpop.permute.xlu0 %1111
        %1113 = vrot.lane.b32.xlu0 %v1104, 112
        %v1114 = vpop.permute.xlu0 %1113
        %1115 = vrot.lane.b32.xlu0 %v1103, 104
        %v1116 = vpop.permute.xlu0 %1115
        %1117 = vrot.lane.b32.xlu0 %v1104, 104
        %v1118 = vpop.permute.xlu0 %1117
        %v1119 = vld [vmem:[#allocation4] sm:$0xf]
        %v1120 = vld [vmem:[#allocation4 + $0x4] sm:$0xf]
        %1123 = vrot.lane.b32.xlu0 %v1119, 120
        %v1124 = vpop.permute.xlu0 %1123
        %1125 = vrot.lane.b32.xlu0 %v1120, 120
        %v1126 = vpop.permute.xlu0 %1125
        %1127 = vrot.lane.b32.xlu0 %v1119, 112
        %v1128 = vpop.permute.xlu0 %1127
        %1129 = vrot.lane.b32.xlu0 %v1120, 112
        %v1130 = vpop.permute.xlu0 %1129
        %1131 = vrot.lane.b32.xlu0 %v1119, 104
        %v1132 = vpop.permute.xlu0 %1131
        %1133 = vrot.lane.b32.xlu0 %v1120, 104
        %v1134 = vpop.permute.xlu0 %1133
        %v1135 = vunpack.c.l.b16 %v1103
        %v1136 = vunpack.c.l.b16 %v1104
        %v1137 = vunpack.c.l.b16 %v1108
        %v1138 = vunpack.c.l.b16 %v1110
        %v1139 = vunpack.c.l.b16 %v1112
        %v1140 = vunpack.c.l.b16 %v1114
        %v1141 = vunpack.c.l.b16 %v1116
        %v1142 = vunpack.c.l.b16 %v1118
        %v1143 = vpack.c.b16 %v1136, %v1135
        %v1144 = vpack.c.b16 %v1138, %v1137
        %v1145 = vpack.c.b16 %v1140, %v1139
        %v1146 = vpack.c.b16 %v1142, %v1141
        %1151 = vxpose.xlu0.c.b16.start [1/8] %v1143, 128
        %1152 = vxpose.xlu0.c.b16.cont [2/8] 0, 128
        %1153 = vxpose.xlu0.c.b16.cont [3/8] 0, 128
        %1154 = vxpose.xlu0.c.b16.cont [4/8] 0, 128
        %1155 = vxpose.xlu0.c.b16.cont [5/8] 0, 128
        %1156 = vxpose.xlu0.c.b16.cont [6/8] 0, 128
        %1157 = vxpose.xlu0.c.b16.cont [7/8] 0, 128
        %1158 = vxpose.xlu0.c.b16.end [8/8] 0, 128
        %v1159 = vpop.trf.xlu0
        %v1160 = vpop.trf.xlu0
        %v1161 = vpop.trf.xlu0
        %v1162 = vpop.trf.xlu0
        %v1163 = vpop.trf.xlu0
        %v1164 = vpop.trf.xlu0
        %v1165 = vpop.trf.xlu0
        %v1166 = vpop.trf.xlu0
        %1167 = vxpose.xlu0.c.b16.start [1/8] %v1144, 128
        %1168 = vxpose.xlu0.c.b16.cont [2/8] 0, 128
        %1169 = vxpose.xlu0.c.b16.cont [3/8] 0, 128
        %1170 = vxpose.xlu0.c.b16.cont [4/8] 0, 128
        %1171 = vxpose.xlu0.c.b16.cont [5/8] 0, 128
        %1172 = vxpose.xlu0.c.b16.cont [6/8] 0, 128
        %1173 = vxpose.xlu0.c.b16.cont [7/8] 0, 128
        %1174 = vxpose.xlu0.c.b16.end [8/8] 0, 128
        %v1175 = vpop.trf.xlu0
        %v1176 = vpop.trf.xlu0
        %v1177 = vpop.trf.xlu0
        %v1178 = vpop.trf.xlu0
        %v1179 = vpop.trf.xlu0
        %v1180 = vpop.trf.xlu0
        %v1181 = vpop.trf.xlu0
        %v1182 = vpop.trf.xlu0
        %1183 = vxpose.xlu0.c.b16.start [1/8] %v1145, 128
        %1184 = vxpose.xlu0.c.b16.cont [2/8] 0, 128
        %1185 = vxpose.xlu0.c.b16.cont [3/8] 0, 128
        %1186 = vxpose.xlu0.c.b16.cont [4/8] 0, 128
        %1187 = vxpose.xlu0.c.b16.cont [5/8] 0, 128
        %1188 = vxpose.xlu0.c.b16.cont [6/8] 0, 128
        %1189 = vxpose.xlu0.c.b16.cont [7/8] 0, 128
        %1190 = vxpose.xlu0.c.b16.end [8/8] 0, 128
        %v1191 = vpop.trf.xlu0
        %v1192 = vpop.trf.xlu0
        %v1193 = vpop.trf.xlu0
        %v1194 = vpop.trf.xlu0
        %v1195 = vpop.trf.xlu0
        %v1196 = vpop.trf.xlu0
        %v1197 = vpop.trf.xlu0
        %v1198 = vpop.trf.xlu0
        %1199 = vxpose.xlu0.c.b16.start [1/8] %v1146, 128
        %1200 = vxpose.xlu0.c.b16.cont [2/8] 0, 128
        %1201 = vxpose.xlu0.c.b16.cont [3/8] 0, 128
        %1202 = vxpose.xlu0.c.b16.cont [4/8] 0, 128
        %1203 = vxpose.xlu0.c.b16.cont [5/8] 0, 128
        %1204 = vxpose.xlu0.c.b16.cont [6/8] 0, 128
        %1205 = vxpose.xlu0.c.b16.cont [7/8] 0, 128
        %1206 = vxpose.xlu0.c.b16.end [8/8] 0, 128
        %v1207 = vpop.trf.xlu0
        %v1208 = vpop.trf.xlu0
        %v1209 = vpop.trf.xlu0
        %v1210 = vpop.trf.xlu0
        %v1211 = vpop.trf.xlu0
        %v1212 = vpop.trf.xlu0
        %v1213 = vpop.trf.xlu0
        %v1214 = vpop.trf.xlu0
        %vm1215 = vcmask 64512
        %v1217 = vsel %vm1215, %v1095, 0
        %vm1219 = vcmask 1043456
        %v1221 = vsel %vm1219, %v1159, 0
        %1223 = vmatpush.bf16.msra.mxu0 0
        %1224 = vmatpush.bf16.msra.mxu0 0
        %1225 = vmatpush.bf16.msra.mxu0 0
        %1226 = vmatpush.bf16.msra.mxu0 0
        %1227 = vmatpush.bf16.msra.mxu0 0
        %1228 = vmatpush.bf16.msra.mxu0 0
        %1229 = vmatpush.bf16.msra.mxu0 0
        %1230 = vmatpush.bf16.msra.mxu0 %v1221
        %1231 = vmatmul.bf16.gmra.mxu0 %v1217
        %v1232 = vpop.f32.mrf.mxu0
        %v1233 = vadd.f32 0.0, %v1232
        %v1234 = vpop.f32.mrf.mxu0
        %1235 = vdwg.mxu0
        %v1237 = vsel %vm1215, %v1098, 0
        %v1240 = vsel %vm1219, %v1175, 0
        %1242 = vmatpush.bf16.msra.mxu0 0
        %1243 = vmatpush.bf16.msra.mxu0 0
        %1244 = vmatpush.bf16.msra.mxu0 0
        %1245 = vmatpush.bf16.msra.mxu0 0
        %1246 = vmatpush.bf16.msra.mxu0 0
        %1247 = vmatpush.bf16.msra.mxu0 0
        %1248 = vmatpush.bf16.msra.mxu0 0
        %1249 = vmatpush.bf16.msra.mxu0 %v1240
        %1250 = vmatmul.bf16.gmra.mxu0 %v1237
        %v1251 = vpop.f32.mrf.mxu0
        %v1252 = vadd.f32 0.0, %v1251
        %v1253 = vpop.f32.mrf.mxu0
        %1254 = vdwg.mxu0
        %v1256 = vsel %vm1215, %v1100, 0
        %v1259 = vsel %vm1219, %v1191, 0
        %1261 = vmatpush.bf16.msra.mxu0 0
        %1262 = vmatpush.bf16.msra.mxu0 0
        %1263 = vmatpush.bf16.msra.mxu0 0
        %1264 = vmatpush.bf16.msra.mxu0 0
        %1265 = vmatpush.bf16.msra.mxu0 0
        %1266 = vmatpush.bf16.msra.mxu0 0
        %1267 = vmatpush.bf16.msra.mxu0 0
        %1268 = vmatpush.bf16.msra.mxu0 %v1259
        %1269 = vmatmul.bf16.gmra.mxu0 %v1256
        %v1270 = vpop.f32.mrf.mxu0
        %v1271 = vadd.f32 0.0, %v1270
        %v1272 = vpop.f32.mrf.mxu0
        %1273 = vdwg.mxu0
        %v1275 = vsel %vm1215, %v1102, 0
        %v1278 = vsel %vm1219, %v1207, 0
        %1280 = vmatpush.bf16.msra.mxu0 0
        %1281 = vmatpush.bf16.msra.mxu0 0
        %1282 = vmatpush.bf16.msra.mxu0 0
        %1283 = vmatpush.bf16.msra.mxu0 0
        %1284 = vmatpush.bf16.msra.mxu0 0
        %1285 = vmatpush.bf16.msra.mxu0 0
        %1286 = vmatpush.bf16.msra.mxu0 0
        %1287 = vmatpush.bf16.msra.mxu0 %v1278
        %1288 = vmatmul.bf16.gmra.mxu0 %v1275
        %v1289 = vpop.f32.mrf.mxu0
        %v1290 = vadd.f32 0.0, %v1289
        %v1291 = vpop.f32.mrf.mxu0
        %1292 = vdwg.mxu0
        %v1293 = vmul.f32 %v1233, 0.35355338
        %v1294 = vmul.f32 %v1252, 0.35355338
        %v1295 = vmul.f32 %v1271, 0.35355338
        %v1296 = vmul.f32 %v1290, 0.35355338
        %vm1297 = vcmask 130048
        %v1298 = vsel %vm1297, %v1293, -inf
        %1299 = vmax.xlane.f32.xlu0 %v1298
        %v1300 = vpop.xlane.xlu0 %1299
        %v1301 = vsel %vm1297, %v1294, -inf
        %1302 = vmax.xlane.f32.xlu0 %v1301
        %v1303 = vpop.xlane.xlu0 %1302
        %v1304 = vsel %vm1297, %v1295, -inf
        %1305 = vmax.xlane.f32.xlu0 %v1304
        %v1306 = vpop.xlane.xlu0 %1305
        %v1307 = vsel %vm1297, %v1296, -inf
        %1308 = vmax.xlane.f32.xlu0 %v1307
        %v1309 = vpop.xlane.xlu0 %1308
        %v1310 = vsub.f32 %v1293, %v1300
        %v1311 = vsub.f32 %v1294, %v1303
        %v1312 = vsub.f32 %v1295, %v1306
        %v1313 = vsub.f32 %v1296, %v1309
        %v1314 = vmul.f32 %v1310, 1.442695
        %v1315 = vpow.pop %v1314
        %v1316 = vmul.f32 %v1311, 1.442695
        %v1317 = vpow.pop %v1316
        %v1318 = vmul.f32 %v1312, 1.442695
        %v1319 = vpow.pop %v1318
        %v1320 = vmul.f32 %v1313, 1.442695
        %v1321 = vpow.pop %v1320
        %v1322 = vsel %vm1297, %v1315, 0.0
        %1323 = vadd.xlane.f32.xlu0 %v1322
        %v1324 = vpop.xlane.xlu0 %1323
        %v1325 = vsel %vm1297, %v1317, 0.0
        %1326 = vadd.xlane.f32.xlu0 %v1325
        %v1327 = vpop.xlane.xlu0 %1326
        %v1328 = vsel %vm1297, %v1319, 0.0
        %1329 = vadd.xlane.f32.xlu0 %v1328
        %v1330 = vpop.xlane.xlu0 %1329
        %v1331 = vsel %vm1297, %v1321, 0.0
        %1332 = vadd.xlane.f32.xlu0 %v1331
        %v1333 = vpop.xlane.xlu0 %1332
        %v1334 = vrcp.pop %v1324
        %v1335 = vrcp.pop %v1327
        %v1336 = vrcp.pop %v1330
        %v1337 = vrcp.pop %v1333
        %v1338 = vmul.f32 %v1315, %v1334
        %v1339 = vmul.f32 %v1317, %v1335
        %v1340 = vmul.f32 %v1319, %v1336
        %v1341 = vmul.f32 %v1321, %v1337
        %v1342 = vpack.c.bf16 %v1338, %v1338
        %v1343 = vpack.c.bf16 %v1339, %v1339
        %v1344 = vpack.c.bf16 %v1340, %v1340
        %v1345 = vpack.c.bf16 %v1341, %v1341
        %v1346 = vunpack.c.l.b16 %v1119
        %v1347 = vunpack.c.l.b16 %v1120
        %v1348 = vunpack.c.l.b16 %v1124
        %v1349 = vunpack.c.l.b16 %v1126
        %v1350 = vunpack.c.l.b16 %v1128
        %v1351 = vunpack.c.l.b16 %v1130
        %v1352 = vunpack.c.l.b16 %v1132
        %v1353 = vunpack.c.l.b16 %v1134
        %v1354 = vpack.c.b16 %v1347, %v1346
        %v1355 = vpack.c.b16 %v1349, %v1348
        %v1356 = vpack.c.b16 %v1351, %v1350
        %v1357 = vpack.c.b16 %v1353, %v1352
        %1362 = vxpose.xlu0.c.b16.start [1/8] %v1354, 128
        %1363 = vxpose.xlu0.c.b16.cont [2/8] 0, 128
        %1364 = vxpose.xlu0.c.b16.cont [3/8] 0, 128
        %1365 = vxpose.xlu0.c.b16.cont [4/8] 0, 128
        %1366 = vxpose.xlu0.c.b16.cont [5/8] 0, 128
        %1367 = vxpose.xlu0.c.b16.cont [6/8] 0, 128
        %1368 = vxpose.xlu0.c.b16.cont [7/8] 0, 128
        %1369 = vxpose.xlu0.c.b16.end [8/8] 0, 128
        %v1370 = vpop.trf.xlu0
        %v1371 = vpop.trf.xlu0
        %v1372 = vpop.trf.xlu0
        %v1373 = vpop.trf.xlu0
        %v1374 = vpop.trf.xlu0
        %v1375 = vpop.trf.xlu0
        %v1376 = vpop.trf.xlu0
        %v1377 = vpop.trf.xlu0
        %1378 = vxpose.xlu0.c.b16.start [1/8] %v1355, 128
        %1379 = vxpose.xlu0.c.b16.cont [2/8] 0, 128
        %1380 = vxpose.xlu0.c.b16.cont [3/8] 0, 128
        %1381 = vxpose.xlu0.c.b16.cont [4/8] 0, 128
        %1382 = vxpose.xlu0.c.b16.cont [5/8] 0, 128
        %1383 = vxpose.xlu0.c.b16.cont [6/8] 0, 128
        %1384 = vxpose.xlu0.c.b16.cont [7/8] 0, 128
        %1385 = vxpose.xlu0.c.b16.end [8/8] 0, 128
        %v1386 = vpop.trf.xlu0
        %v1387 = vpop.trf.xlu0
        %v1388 = vpop.trf.xlu0
        %v1389 = vpop.trf.xlu0
        %v1390 = vpop.trf.xlu0
        %v1391 = vpop.trf.xlu0
        %v1392 = vpop.trf.xlu0
        %v1393 = vpop.trf.xlu0
        %1394 = vxpose.xlu0.c.b16.start [1/8] %v1356, 128
        %1395 = vxpose.xlu0.c.b16.cont [2/8] 0, 128
        %1396 = vxpose.xlu0.c.b16.cont [3/8] 0, 128
        %1397 = vxpose.xlu0.c.b16.cont [4/8] 0, 128
        %1398 = vxpose.xlu0.c.b16.cont [5/8] 0, 128
        %1399 = vxpose.xlu0.c.b16.cont [6/8] 0, 128
        %1400 = vxpose.xlu0.c.b16.cont [7/8] 0, 128
        %1401 = vxpose.xlu0.c.b16.end [8/8] 0, 128
        %v1402 = vpop.trf.xlu0
        %v1403 = vpop.trf.xlu0
        %v1404 = vpop.trf.xlu0
        %v1405 = vpop.trf.xlu0
        %v1406 = vpop.trf.xlu0
        %v1407 = vpop.trf.xlu0
        %v1408 = vpop.trf.xlu0
        %v1409 = vpop.trf.xlu0
        %1410 = vxpose.xlu0.c.b16.start [1/8] %v1357, 128
        %1411 = vxpose.xlu0.c.b16.cont [2/8] 0, 128
        %1412 = vxpose.xlu0.c.b16.cont [3/8] 0, 128
        %1413 = vxpose.xlu0.c.b16.cont [4/8] 0, 128
        %1414 = vxpose.xlu0.c.b16.cont [5/8] 0, 128
        %1415 = vxpose.xlu0.c.b16.cont [6/8] 0, 128
        %1416 = vxpose.xlu0.c.b16.cont [7/8] 0, 128
        %1417 = vxpose.xlu0.c.b16.end [8/8] 0, 128
        %v1418 = vpop.trf.xlu0
        %v1419 = vpop.trf.xlu0
        %v1420 = vpop.trf.xlu0
        %v1421 = vpop.trf.xlu0
        %v1422 = vpop.trf.xlu0
        %v1423 = vpop.trf.xlu0
        %v1424 = vpop.trf.xlu0
        %v1425 = vpop.trf.xlu0
        %v1427 = vsel %vm1297, %v1370, 0
        %v1430 = vsel %vm1297, %v1342, 0
        %1432 = vmatpush.bf16.xpose.msra.mxu0 0
        %1433 = vmatpush.bf16.xpose.msra.mxu0 0
        %1434 = vmatpush.bf16.xpose.msra.mxu0 0
        %1435 = vmatpush.bf16.xpose.msra.mxu0 0
        %1436 = vmatpush.bf16.xpose.msra.mxu0 0
        %1437 = vmatpush.bf16.xpose.msra.mxu0 0
        %1438 = vmatpush.bf16.xpose.msra.mxu0 0
        %1439 = vmatpush.bf16.xpose.msra.mxu0 %v1430
        %1440 = vmatmul.bf16.gmra.mxu0 %v1427
        %v1441 = vpop.f32.mrf.mxu0
        %v1442 = vadd.f32 0.0, %v1441
        %v1443 = vpop.f32.mrf.mxu0
        %1444 = vdwg.mxu0
        %v1446 = vsel %vm1297, %v1386, 0
        %v1449 = vsel %vm1297, %v1343, 0
        %1451 = vmatpush.bf16.xpose.msra.mxu0 0
        %1452 = vmatpush.bf16.xpose.msra.mxu0 0
        %1453 = vmatpush.bf16.xpose.msra.mxu0 0
        %1454 = vmatpush.bf16.xpose.msra.mxu0 0
        %1455 = vmatpush.bf16.xpose.msra.mxu0 0
        %1456 = vmatpush.bf16.xpose.msra.mxu0 0
        %1457 = vmatpush.bf16.xpose.msra.mxu0 0
        %1458 = vmatpush.bf16.xpose.msra.mxu0 %v1449
        %1459 = vmatmul.bf16.gmra.mxu0 %v1446
        %v1460 = vpop.f32.mrf.mxu0
        %v1461 = vadd.f32 0.0, %v1460
        %v1462 = vpop.f32.mrf.mxu0
        %1463 = vdwg.mxu0
        %v1465 = vsel %vm1297, %v1402, 0
        %v1468 = vsel %vm1297, %v1344, 0
        %1470 = vmatpush.bf16.xpose.msra.mxu0 0
        %1471 = vmatpush.bf16.xpose.msra.mxu0 0
        %1472 = vmatpush.bf16.xpose.msra.mxu0 0
        %1473 = vmatpush.bf16.xpose.msra.mxu0 0
        %1474 = vmatpush.bf16.xpose.msra.mxu0 0
        %1475 = vmatpush.bf16.xpose.msra.mxu0 0
        %1476 = vmatpush.bf16.xpose.msra.mxu0 0
        %1477 = vmatpush.bf16.xpose.msra.mxu0 %v1468
        %1478 = vmatmul.bf16.gmra.mxu0 %v1465
        %v1479 = vpop.f32.mrf.mxu0
        %v1480 = vadd.f32 0.0, %v1479
        %v1481 = vpop.f32.mrf.mxu0
        %1482 = vdwg.mxu0
        %v1484 = vsel %vm1297, %v1418, 0
        %v1487 = vsel %vm1297, %v1345, 0
        %1489 = vmatpush.bf16.xpose.msra.mxu0 0
        %1490 = vmatpush.bf16.xpose.msra.mxu0 0
        %1491 = vmatpush.bf16.xpose.msra.mxu0 0
        %1492 = vmatpush.bf16.xpose.msra.mxu0 0
        %1493 = vmatpush.bf16.xpose.msra.mxu0 0
        %1494 = vmatpush.bf16.xpose.msra.mxu0 0
        %1495 = vmatpush.bf16.xpose.msra.mxu0 0
        %1496 = vmatpush.bf16.xpose.msra.mxu0 %v1487
        %1497 = vmatmul.bf16.gmra.mxu0 %v1484
        %v1498 = vpop.f32.mrf.mxu0
        %v1499 = vadd.f32 0.0, %v1498
        %v1500 = vpop.f32.mrf.mxu0
        %1501 = vdwg.mxu0
        %1502 = vxpose.xlu0.b32.start [1/16] %v1442, 128
        %1503 = vxpose.xlu0.b32.cont [2/16] 0.0, 128
        %1504 = vxpose.xlu0.b32.cont [3/16] 0.0, 128
        %1505 = vxpose.xlu0.b32.cont [4/16] 0.0, 128
        %1506 = vxpose.xlu0.b32.cont [5/16] 0.0, 128
        %1507 = vxpose.xlu0.b32.cont [6/16] 0.0, 128
        %1508 = vxpose.xlu0.b32.cont [7/16] 0.0, 128
        %1509 = vxpose.xlu0.b32.cont [8/16] 0.0, 128
        %1510 = vxpose.xlu0.b32.cont [9/16] 0.0, 128
        %1511 = vxpose.xlu0.b32.cont [10/16] 0.0, 128
        %1512 = vxpose.xlu0.b32.cont [11/16] 0.0, 128
        %1513 = vxpose.xlu0.b32.cont [12/16] 0.0, 128
        %1514 = vxpose.xlu0.b32.cont [13/16] 0.0, 128
        %1515 = vxpose.xlu0.b32.cont [14/16] 0.0, 128
        %1516 = vxpose.xlu0.b32.cont [15/16] 0.0, 128
        %1517 = vxpose.xlu0.b32.end [16/16] 0.0, 128
        %v1518 = vpop.trf.xlu0
        %v1519 = vpop.trf.xlu0
        %v1520 = vpop.trf.xlu0
        %v1521 = vpop.trf.xlu0
        %v1522 = vpop.trf.xlu0
        %v1523 = vpop.trf.xlu0
        %v1524 = vpop.trf.xlu0
        %v1525 = vpop.trf.xlu0
        %v1526 = vpop.trf.xlu0
        %v1527 = vpop.trf.xlu0
        %v1528 = vpop.trf.xlu0
        %v1529 = vpop.trf.xlu0
        %v1530 = vpop.trf.xlu0
        %v1531 = vpop.trf.xlu0
        %v1532 = vpop.trf.xlu0
        %v1533 = vpop.trf.xlu0
        %1534 = vxpose.xlu0.b32.start [1/16] %v1461, 128
        %1535 = vxpose.xlu0.b32.cont [2/16] 0.0, 128
        %1536 = vxpose.xlu0.b32.cont [3/16] 0.0, 128
        %1537 = vxpose.xlu0.b32.cont [4/16] 0.0, 128
        %1538 = vxpose.xlu0.b32.cont [5/16] 0.0, 128
        %1539 = vxpose.xlu0.b32.cont [6/16] 0.0, 128
        %1540 = vxpose.xlu0.b32.cont [7/16] 0.0, 128
        %1541 = vxpose.xlu0.b32.cont [8/16] 0.0, 128
        %1542 = vxpose.xlu0.b32.cont [9/16] 0.0, 128
        %1543 = vxpose.xlu0.b32.cont [10/16] 0.0, 128
        %1544 = vxpose.xlu0.b32.cont [11/16] 0.0, 128
        %1545 = vxpose.xlu0.b32.cont [12/16] 0.0, 128
        %1546 = vxpose.xlu0.b32.cont [13/16] 0.0, 128
        %1547 = vxpose.xlu0.b32.cont [14/16] 0.0, 128
        %1548 = vxpose.xlu0.b32.cont [15/16] 0.0, 128
        %1549 = vxpose.xlu0.b32.end [16/16] 0.0, 128
        %v1550 = vpop.trf.xlu0
        %v1551 = vpop.trf.xlu0
        %v1552 = vpop.trf.xlu0
        %v1553 = vpop.trf.xlu0
        %v1554 = vpop.trf.xlu0
        %v1555 = vpop.trf.xlu0
        %v1556 = vpop.trf.xlu0
        %v1557 = vpop.trf.xlu0
        %v1558 = vpop.trf.xlu0
        %v1559 = vpop.trf.xlu0
        %v1560 = vpop.trf.xlu0
        %v1561 = vpop.trf.xlu0
        %v1562 = vpop.trf.xlu0
        %v1563 = vpop.trf.xlu0
        %v1564 = vpop.trf.xlu0
        %v1565 = vpop.trf.xlu0
        %1566 = vxpose.xlu0.b32.start [1/16] %v1480, 128
        %1567 = vxpose.xlu0.b32.cont [2/16] 0.0, 128
        %1568 = vxpose.xlu0.b32.cont [3/16] 0.0, 128
        %1569 = vxpose.xlu0.b32.cont [4/16] 0.0, 128
        %1570 = vxpose.xlu0.b32.cont [5/16] 0.0, 128
        %1571 = vxpose.xlu0.b32.cont [6/16] 0.0, 128
        %1572 = vxpose.xlu0.b32.cont [7/16] 0.0, 128
        %1573 = vxpose.xlu0.b32.cont [8/16] 0.0, 128
        %1574 = vxpose.xlu0.b32.cont [9/16] 0.0, 128
        %1575 = vxpose.xlu0.b32.cont [10/16] 0.0, 128
        %1576 = vxpose.xlu0.b32.cont [11/16] 0.0, 128
        %1577 = vxpose.xlu0.b32.cont [12/16] 0.0, 128
        %1578 = vxpose.xlu0.b32.cont [13/16] 0.0, 128
        %1579 = vxpose.xlu0.b32.cont [14/16] 0.0, 128
        %1580 = vxpose.xlu0.b32.cont [15/16] 0.0, 128
        %1581 = vxpose.xlu0.b32.end [16/16] 0.0, 128
        %v1582 = vpop.trf.xlu0
        %v1583 = vpop.trf.xlu0
        %v1584 = vpop.trf.xlu0
        %v1585 = vpop.trf.xlu0
        %v1586 = vpop.trf.xlu0
        %v1587 = vpop.trf.xlu0
        %v1588 = vpop.trf.xlu0
        %v1589 = vpop.trf.xlu0
        %v1590 = vpop.trf.xlu0
        %v1591 = vpop.trf.xlu0
        %v1592 = vpop.trf.xlu0
        %v1593 = vpop.trf.xlu0
        %v1594 = vpop.trf.xlu0
        %v1595 = vpop.trf.xlu0
        %v1596 = vpop.trf.xlu0
        %v1597 = vpop.trf.xlu0
        %1598 = vxpose.xlu0.b32.start [1/16] %v1499, 128
        %1599 = vxpose.xlu0.b32.cont [2/16] 0.0, 128
        %1600 = vxpose.xlu0.b32.cont [3/16] 0.0, 128
        %1601 = vxpose.xlu0.b32.cont [4/16] 0.0, 128
        %1602 = vxpose.xlu0.b32.cont [5/16] 0.0, 128
        %1603 = vxpose.xlu0.b32.cont [6/16] 0.0, 128
        %1604 = vxpose.xlu0.b32.cont [7/16] 0.0, 128
        %1605 = vxpose.xlu0.b32.cont [8/16] 0.0, 128
        %1606 = vxpose.xlu0.b32.cont [9/16] 0.0, 128
        %1607 = vxpose.xlu0.b32.cont [10/16] 0.0, 128
        %1608 = vxpose.xlu0.b32.cont [11/16] 0.0, 128
        %1609 = vxpose.xlu0.b32.cont [12/16] 0.0, 128
        %1610 = vxpose.xlu0.b32.cont [13/16] 0.0, 128
        %1611 = vxpose.xlu0.b32.cont [14/16] 0.0, 128
        %1612 = vxpose.xlu0.b32.cont [15/16] 0.0, 128
        %1613 = vxpose.xlu0.b32.end [16/16] 0.0, 128
        %v1614 = vpop.trf.xlu0
        %v1615 = vpop.trf.xlu0
        %v1616 = vpop.trf.xlu0
        %v1617 = vpop.trf.xlu0
        %v1618 = vpop.trf.xlu0
        %v1619 = vpop.trf.xlu0
        %v1620 = vpop.trf.xlu0
        %v1621 = vpop.trf.xlu0
        %v1622 = vpop.trf.xlu0
        %v1623 = vpop.trf.xlu0
        %v1624 = vpop.trf.xlu0
        %v1625 = vpop.trf.xlu0
        %v1626 = vpop.trf.xlu0
        %v1627 = vpop.trf.xlu0
        %v1628 = vpop.trf.xlu0
        %v1629 = vpop.trf.xlu0
        %v1630 = vrot.slane %v1582, 4
        %vm1631 = vcmask 1047556
        %v1632 = vsel %vm1631, %v1630, %v1518
        %v1633 = vrot.slane %v1518, 4
        %v1634 = vsel %vm1631, %v1582, %v1633
        %v1636 = vunpack.c.l.s4 1983009808
        %v1637 = vunpack.c.0.s8 %v1636
        %v1638 = vperm.slane %v1632, %v1637
        %v1640 = vunpack.c.l.s4 1983009808
        %v1641 = vunpack.c.0.s8 %v1640
        %v1642 = vperm.slane %v1634, %v1641
        %v1643 = vrot.slane %v1614, 4
        %v1644 = vsel %vm1631, %v1643, %v1550
        %v1645 = vrot.slane %v1550, 4
        %v1646 = vsel %vm1631, %v1614, %v1645
        %v1648 = vunpack.c.l.s4 1983009808
        %v1649 = vunpack.c.0.s8 %v1648
        %v1650 = vperm.slane %v1644, %v1649
        %v1652 = vunpack.c.l.s4 1983009808
        %v1653 = vunpack.c.0.s8 %v1652
        %v1654 = vperm.slane %v1646, %v1653
        %v1655 = vrot.slane %v1650, 4
        %v1656 = vsel %vm1631, %v1655, %v1638
        %v1657 = vrot.slane %v1638, 4
        %v1658 = vsel %vm1631, %v1650, %v1657
        %v1660 = vunpack.c.l.s4 1934713408
        %v1661 = vunpack.c.0.s8 %v1660
        %v1662 = vperm.slane %v1656, %v1661
        %v1664 = vunpack.c.l.s4 1934713408
        %v1665 = vunpack.c.0.s8 %v1664
        %v1666 = vperm.slane %v1658, %v1665
        %v1667 = vrot.slane %v1654, 4
        %v1668 = vsel %vm1631, %v1667, %v1642
        %v1669 = vrot.slane %v1642, 4
        %v1670 = vsel %vm1631, %v1654, %v1669
        %v1672 = vunpack.c.l.s4 1934713408
        %v1673 = vunpack.c.0.s8 %v1672
        %v1674 = vperm.slane %v1668, %v1673
        %v1676 = vunpack.c.l.s4 1934713408
        %v1677 = vunpack.c.0.s8 %v1676
        %v1678 = vperm.slane %v1670, %v1677
        %v1679 = vrot.slane %v1662, 4
        %v1680 = vsel %vm1631, 0.0, %v1679
        %v1681 = vrot.slane %v1666, 4
        %v1682 = vsel %vm1631, 0.0, %v1681
        %v1683 = vrot.slane %v1674, 4
        %v1684 = vsel %vm1631, 0.0, %v1683
        %v1685 = vrot.slane %v1678, 4
        %v1686 = vsel %vm1631, 0.0, %v1685
        %v1687 = vsel %vm1631, %v1681, %v1662
        %v1689 = vunpack.c.l.s4 1983009808
        %v1690 = vunpack.c.0.s8 %v1689
        %v1691 = vperm.slane %v1687, %v1690
        %v1692 = vrot.slane %v1682, 4
        %v1693 = vsel %vm1631, %v1692, %v1680
        %v1695 = vunpack.c.l.s4 1983009808
        %v1696 = vunpack.c.0.s8 %v1695
        %v1697 = vperm.slane %v1693, %v1696
        %v1698 = vsel %vm1631, %v1685, %v1674
        %v1700 = vunpack.c.l.s4 1983009808
        %v1701 = vunpack.c.0.s8 %v1700
        %v1702 = vperm.slane %v1698, %v1701
        %v1703 = vrot.slane %v1686, 4
        %v1704 = vsel %vm1631, %v1703, %v1684
        %v1706 = vunpack.c.l.s4 1983009808
        %v1707 = vunpack.c.0.s8 %v1706
        %v1708 = vperm.slane %v1704, %v1707
        %v1709 = vrot.slane %v1697, 4
        %v1710 = vsel %vm1631, %v1709, %v1691
        %v1711 = vrot.slane %v1691, 4
        %v1712 = vsel %vm1631, %v1697, %v1711
        %v1714 = vunpack.c.l.s4 1934713408
        %v1715 = vunpack.c.0.s8 %v1714
        %v1716 = vperm.slane %v1710, %v1715
        %v1718 = vunpack.c.l.s4 1934713408
        %v1719 = vunpack.c.0.s8 %v1718
        %v1720 = vperm.slane %v1712, %v1719
        %v1721 = vrot.slane %v1708, 4
        %v1722 = vsel %vm1631, %v1721, %v1702
        %v1723 = vrot.slane %v1702, 4
        %v1724 = vsel %vm1631, %v1708, %v1723
        %v1726 = vunpack.c.l.s4 1934713408
        %v1727 = vunpack.c.0.s8 %v1726
        %v1728 = vperm.slane %v1722, %v1727
        %v1730 = vunpack.c.l.s4 1934713408
        %v1731 = vunpack.c.0.s8 %v1730
        %v1732 = vperm.slane %v1724, %v1731
        %v1733 = vrot.slane %v1728, 4
        %v1734 = vsel %vm1631, %v1733, %v1716
        %v1735 = vrot.slane %v1716, 4
        %v1736 = vsel %vm1631, %v1728, %v1735
        %v1737 = vrot.slane %v1732, 4
        %v1738 = vsel %vm1631, %v1737, %v1720
        %v1739 = vrot.slane %v1720, 4
        %v1740 = vsel %vm1631, %v1732, %v1739
        %1742 = vrot.lane.b32.xlu0 %v1736, 8
        %v1743 = vpop.permute.xlu0 %1742
        %1746 = vrot.lane.b32.xlu0 %v1738, 16
        %v1747 = vpop.permute.xlu0 %1746
        %1750 = vrot.lane.b32.xlu0 %v1740, 24
        %v1751 = vpop.permute.xlu0 %1750
        %v1753 = vsel %vm1215, %v1734, %v1743
        %v1754 = vsel %vm1297, %v1753, %v1747
        %vm1755 = vcmask 195584
        %v1756 = vsel %vm1755, %v1754, %v1751
        %v1757 = vpack.c.bf16 %v1756, %v1756
        %v1758 = vld [vmem:[%s765] sm:$0xf]
        %v1759 = vld [vmem:[%s765 + $0x4] sm:$0xf]
        %v1760 = vld [vmem:[%s765 + $0x8] sm:$0xf]
        %v1761 = vld [vmem:[%s765 + $0xc] sm:$0xf]
        %v1762 = vld [vmem:[%s931] sm:$0x1]
        %v1764 = vperm.slane %v1762, 0
        %v1770 = vunpack.c.l.b16 %v1758
        %v1771 = vunpack.c.l.b16 %v1759
        %v1772 = vunpack.c.l.b16 %v1760
        %v1773 = vunpack.c.l.b16 %v1761
        %v1774 = vpack.c.b16 %v1771, %v1770
        %v1775 = vpack.c.b16 %v1773, %v1772
        %v1779 = vsel %vm1078, %v1757, 0
        %1781 = vmatpush.bf16.msra.mxu0 0
        %1782 = vmatpush.bf16.msra.mxu0 0
        %1783 = vmatpush.bf16.msra.mxu0 0
        %1784 = vmatpush.bf16.msra.mxu0 0
        %1785 = vmatpush.bf16.msra.mxu0 0
        %1786 = vmatpush.bf16.msra.mxu0 0
        %1787 = vmatpush.bf16.msra.mxu0 %v1775
        %1788 = vmatpush.bf16.msra.mxu0 %v1774
        %1789 = vmatmul.bf16.gmra.mxu0 %v1779
        %v1790 = vpop.f32.mrf.mxu0
        %v1791 = vadd.f32 %v1764, %v1790
        %v1792 = vpop.f32.mrf.mxu0
        %1793 = vdwg.mxu0
        %v1794 = vunpack.c.l.bf16 %v1057
        %v1795 = vadd.f32 %v1794, %v1791
        %v1796 = vld [vmem:[%s774] sm:$0x1]
        %v1797 = vld [vmem:[%s934] sm:$0x1]
        %v1798 = vsel %vm1078, %v1795, 0.0
        %1799 = vadd.xlane.f32.xlu0 %v1798
        %v1800 = vpop.xlane.xlu0 %1799
        %v1801 = vrcp.pop 32.0
        %v1802 = vmul.f32 32.0, %v1801
        %v1803 = vsub.f32 1.0, %v1802
        %v1804 = vmul.f32 %v1801, %v1803
        %v1805 = vadd.f32 %v1801, %v1804
        %vm1806 = vweird.f32 %v1801
        %v1807 = vsel %vm1806, %v1801, %v1805
        %v1808 = vmul.f32 %v1800, %v1807
        %v1809 = vsub.f32 %v1795, %v1808
        %v1810 = vmul.f32 %v1809, %v1809
        %v1811 = vsel %vm1078, %v1810, 0.0
        %1812 = vadd.xlane.f32.xlu0 %v1811
        %v1813 = vpop.xlane.xlu0 %1812
        %v1814 = vmul.f32 %v1813, %v1807
        %v1815 = vadd.f32 %v1814, 1e-05
        %v1816 = vrsqrt.pop %v1815
        %v1817 = vmul.f32 %v1816, %v1815
        %v1818 = vmul.f32 %v1817, %v1816
        %v1819 = vmul.f32 0.5, %v1818
        %v1820 = vsub.f32 1.5, %v1819
        %v1821 = vmul.f32 %v1816, %v1820
        %vm1822 = vweird.f32 %v1815
        %vm1823 = vweird.f32 %v1816
        %vm1824 = vmor %vm1822, %vm1823
        %v1825 = vsel %vm1824, %v1816, %v1821
        %v1826 = vmul.f32 %v1809, %v1825
        %v1828 = vperm.slane %v1796, 0
        %v1830 = vmul.f32 %v1826, %v1828
        %v1832 = vperm.slane %v1797, 0
        %v1834 = vadd.f32 %v1830, %v1832
        %v1835 = vpack.c.bf16 %v1834, %v1834
        %v1836 = vld [vmem:[%s784] sm:$0xf]
        %v1837 = vld [vmem:[%s784 + $0x4] sm:$0xf]
        %v1838 = vld [vmem:[%s784 + $0x8] sm:$0xf]
        %v1839 = vld [vmem:[%s784 + $0xc] sm:$0xf]
        %v1840 = vld [vmem:[%s937] sm:$0x1]
        %v1842 = vperm.slane %v1840, 0
        %v1848 = vunpack.c.l.b16 %v1836
        %v1849 = vunpack.c.l.b16 %v1837
        %v1850 = vunpack.c.l.b16 %v1838
        %v1851 = vunpack.c.l.b16 %v1839
        %v1852 = vpack.c.b16 %v1849, %v1848
        %v1853 = vpack.c.b16 %v1851, %v1850
        %v1857 = vsel %vm1078, %v1835, 0
        %1859 = vmatpush.bf16.msra.mxu0 0
        %1860 = vmatpush.bf16.msra.mxu0 0
        %1861 = vmatpush.bf16.msra.mxu0 0
        %1862 = vmatpush.bf16.msra.mxu0 0
        %1863 = vmatpush.bf16.msra.mxu0 0
        %1864 = vmatpush.bf16.msra.mxu0 0
        %1865 = vmatpush.bf16.msra.mxu0 %v1853
        %1866 = vmatpush.bf16.msra.mxu0 %v1852
        %1867 = vmatmul.bf16.gmra.mxu0 %v1857
        %v1868 = vpop.f32.mrf.mxu0
        %v1869 = vadd.f32 %v1842, %v1868
        %v1870 = vpop.f32.mrf.mxu0
        %1871 = vdwg.mxu0
        %v1872 = vmax.f32 %v1869, 0.0
        %v1873 = vpack.c.bf16 %v1872, %v1872
        %v1874 = vld [vmem:[%s942] sm:$0xf]
        %v1875 = vld [vmem:[%s942 + $0x4] sm:$0xf]
        %v1876 = vld [vmem:[%s942 + $0x8] sm:$0xf]
        %v1877 = vld [vmem:[%s942 + $0xc] sm:$0xf]
        %v1878 = vld [vmem:[%s942 + $0x10] sm:$0xf]
        %v1879 = vld [vmem:[%s942 + $0x14] sm:$0xf]
        %v1880 = vld [vmem:[%s942 + $0x18] sm:$0xf]
        %v1881 = vld [vmem:[%s942 + $0x1c] sm:$0xf]
        %v1882 = vld [vmem:[%s945] sm:$0x1]
        %v1884 = vperm.slane %v1882, 0
        %v1894 = vunpack.c.l.b16 %v1874
        %v1895 = vunpack.c.l.b16 %v1875
        %v1896 = vunpack.c.l.b16 %v1876
        %v1897 = vunpack.c.l.b16 %v1877
        %v1898 = vunpack.c.l.b16 %v1878
        %v1899 = vunpack.c.l.b16 %v1879
        %v1900 = vunpack.c.l.b16 %v1880
        %v1901 = vunpack.c.l.b16 %v1881
        %v1902 = vpack.c.b16 %v1895, %v1894
        %v1903 = vpack.c.b16 %v1897, %v1896
        %v1904 = vpack.c.b16 %v1899, %v1898
        %v1905 = vpack.c.b16 %v1901, %v1900
        %vm1910 = vcmask 523264
        %v1912 = vsel %vm1910, %v1873, 0
        %1914 = vmatpush.bf16.msra.mxu0 0
        %1915 = vmatpush.bf16.msra.mxu0 0
        %1916 = vmatpush.bf16.msra.mxu0 0
        %1917 = vmatpush.bf16.msra.mxu0 0
        %1918 = vmatpush.bf16.msra.mxu0 %v1905
        %1919 = vmatpush.bf16.msra.mxu0 %v1904
        %1920 = vmatpush.bf16.msra.mxu0 %v1903
        %1921 = vmatpush.bf16.msra.mxu0 %v1902
        %1922 = vmatmul.bf16.gmra.mxu0 %v1912
        %v1923 = vpop.f32.mrf.mxu0
        %v1924 = vadd.f32 %v1884, %v1923
        %v1925 = vpop.f32.mrf.mxu0
        %1926 = vdwg.mxu0
        %v1927 = vadd.f32 %v1834, %v1924
        %v1928 = vld [vmem:[%s793] sm:$0x1]
        %v1929 = vld [vmem:[%s948] sm:$0x1]
        %v1930 = vsel %vm1078, %v1927, 0.0
        %1931 = vadd.xlane.f32.xlu0 %v1930
        %v1932 = vpop.xlane.xlu0 %1931
        %v1933 = vmul.f32 %v1932, %v1807
        %v1934 = vsub.f32 %v1927, %v1933
        %v1935 = vmul.f32 %v1934, %v1934
        %v1936 = vsel %vm1078, %v1935, 0.0
        %1937 = vadd.xlane.f32.xlu0 %v1936
        %v1938 = vpop.xlane.xlu0 %1937
        %v1939 = vmul.f32 %v1938, %v1807
        %v1940 = vadd.f32 %v1939, 1e-05
        %v1941 = vrsqrt.pop %v1940
        %v1942 = vmul.f32 %v1941, %v1940
        %v1943 = vmul.f32 %v1942, %v1941
        %v1944 = vmul.f32 0.5, %v1943
        %v1945 = vsub.f32 1.5, %v1944
        %v1946 = vmul.f32 %v1941, %v1945
        %vm1947 = vweird.f32 %v1940
        %vm1948 = vweird.f32 %v1941
        %vm1949 = vmor %vm1947, %vm1948
        %v1950 = vsel %vm1949, %v1941, %v1946
        %v1951 = vmul.f32 %v1934, %v1950
        %v1953 = vperm.slane %v1928, 0
        %v1955 = vmul.f32 %v1951, %v1953
        %v1957 = vperm.slane %v1929, 0
        %v1959 = vadd.f32 %v1955, %v1957
        %v1960 = vpack.c.bf16 %v1959, %v1959
        %vm1961 = vcmask 257024
        %1962 = vst.msk [vmem:[%s1056] sm:$0xf] %vm1961, %v1960
        %p1963 = scmp.eq.s32.totalorder %s49, 1
        // Predicated region
        $region121: #{tpu_custom_call.1} parent=87 // pred_check
          %p1964 = pneg %p1963
        $region122: #{tpu_custom_call.1} parent=87 // pred_check_branch
          %1966 = sbr.rel (%p1964) target = $region124
        $region123: #{tpu_custom_call.1} parent=87 // pred_region
          %s1967 = scalar_lea.vmem %s907, %s1052 [#allocation16]
          %1968 = vst.msk [vmem:[%s1967] sm:$0xff] %vm1078, %v1959
        $region124: #{tpu_custom_call.1} parent=87 // pred_fallthru
          _
        %s1969 = sand.u32 %s512, 1
        %s1970 = scalar_lea.sflag [#allocation7], %s1969
        %s1971 = sand.u32 %s512, 1
        %s1972 = smul.addr %s1971, 16
        %s1973 = scalar_lea.vmem [#allocation16], %s1972
        // Predicated region
        $region125: #{tpu_custom_call.1} parent=87 // pred_check
          %p1974 = pneg %p522
        $region126: #{tpu_custom_call.1} parent=87 // pred_check_branch
          %1976 = sbr.rel (%p1974) target = $region128
        $region127: #{tpu_custom_call.1} parent=87 // pred_region
          %1978 = vsyncadd %s1970, 0
          %s1979 = smul.addr %s48, 2
          %s1980 = smul.addr %s1979, 8
          %s1981 = scalar_lea.hbm %s17, %s1980
          %s1982 = sshll.u32 %s1973, 4
          %s1983 = int_to_ptr.vmem [resolvable:$true] %s1982
          %s1984 = sshll.u32 %s1981, 4
          %s1985 = int_to_ptr.hbm [resolvable:$true] %s1984
          %1990 = dma.vmem_to_hbm [thread:$0]  %s1983, 256, %s1985, %s1970, 128, 128, 8
        $region128: #{tpu_custom_call.1} parent=87 // pred_fallthru
          _
      $region88: #{tpu_custom_call.1} parent=5 // pred_fallthru
        _
      %p1991 = scmp.le.s32.totalorder 2, %s38
      // Predicated region
      $region129: #{tpu_custom_call.1} parent=5 // pred_check
        %p1992 = pneg %p1991
      $region130: #{tpu_custom_call.1} parent=5 // pred_check_branch
        %1994 = sbr.rel (%p1992) target = $region132
      $region131: #{tpu_custom_call.1} parent=5 // pred_region
        %s1995 = ssub.s32 %s38, 2
        // Predicated region
        $region133: #{tpu_custom_call.1} parent=131 // pred_check
          %p1996 = pneg %p528
        $region134: #{tpu_custom_call.1} parent=131 // pred_check_branch
          %1998 = sbr.rel (%p1996) target = $region136
        $region135: #{tpu_custom_call.1} parent=131 // pred_region
          %s1999 = sand.u32 %s513, 1
          %s2000 = scalar_lea.sflag [#allocation7], %s1999
          %s2001 = sand.u32 %s513, 1
          %s2002 = smul.addr %s2001, 16
          %s2003 = scalar_lea.vmem [#allocation16], %s2002
          %2005 = dma.done %s2000, 256
        $region136: #{tpu_custom_call.1} parent=131 // pred_fallthru
          _
      $region132: #{tpu_custom_call.1} parent=5 // pred_fallthru
        _
    $region6: #{tpu_custom_call.1} parent=1 // loop_footer
      %s42 = sadd.s32 1, %s38
    $region7: #{tpu_custom_call.1} parent=1 // loop_footer_branch
      %37 = sbr.rel target = $region3
    $region8: #{tpu_custom_call.1} parent=1 // loop_exit
      _
    %2006 = vsyncpa [#allocation6], 1
    %s2007 = scalar_lea.sflag [#allocation6], 1
    %2008 = vsyncpa %s2007, 1
    %2009 = vsyncpa [#allocation9], 1
    %s2010 = scalar_lea.sflag [#allocation9], 1
    %2011 = vsyncpa %s2010, 1
    %2012 = vsyncpa [#allocation12], 1
    %s2013 = scalar_lea.sflag [#allocation12], 1
    %2014 = vsyncpa %s2013, 1
    %2015 = vsyncpa [#allocation15], 1
    %s2016 = scalar_lea.sflag [#allocation15], 1
    %2017 = vsyncpa %s2016, 1
    %2018 = vsyncpa [#allocation7], 1
    %s2019 = scalar_lea.sflag [#allocation7], 1
    %2020 = vsyncpa %s2019, 1

</llo_original>
